<compile_context>
chip_gen: v5e
topology: v5e:2x2
jax: 0.10.0
libtpu: 0.0.40
codegen_flags: <defaults>
</compile_context>

<pallas_src>
import numpy as np

import jax
import jax.numpy as jnp
from jax.experimental import pallas as pl
from jax.experimental.pallas import tpu as pltpu


def _round_up(n, m):
    return ((n + m - 1) // m) * m


def encoder_kernel(x_ref, w_ref, b_ref, eps_ref, z0_ref, ctx_ref, acc_ref):
    """One (TB, TK) x (TK, 3*Dp) MXU step; epilogue at the last K step."""
    Dp = z0_ref.shape[-1]
    k = pl.program_id(1)
    nk = pl.num_programs(1)

    @pl.when(k == 0)
    def _():
        acc_ref[...] = jnp.zeros_like(acc_ref)

    # bf16 x bf16 -> f32 accumulation on the MXU.
    acc_ref[...] += jnp.dot(x_ref[...], w_ref[...],
                            preferred_element_type=jnp.float32)

    @pl.when(k == nk - 1)
    def _():
        h = acc_ref[...] + b_ref[...]
        # Column slices at Dp-aligned (multiple-of-128) offsets are free.
        mu = h[:, 0:Dp]
        sigma = jnp.exp(h[:, Dp:2 * Dp])        # exp goes to the EUP slot
        ctx = h[:, 2 * Dp:3 * Dp]
        # z0 = sigma * eps + mu   (eps is (1, Dp), broadcast over batch rows)
        z0_ref[...] = (sigma * eps_ref[...] + mu).astype(z0_ref.dtype)
        ctx_ref[...] = ctx.astype(ctx_ref.dtype)


def _vmem_budget_bytes():
    """80% of per-core VMEM, queried from hardware; v7x-safe 64 MiB fallback."""
    cap = 64 * 1024 * 1024
    try:
        info = pltpu.get_tpu_info()
        cap = int(getattr(info, "vmem_capacity_bytes", cap) or cap)
    except Exception:
        pass
    return min(int(cap * 0.8), 100 * 1024 * 1024)


def _choose_tiles(B8, Dp, out_bytes, vmem_budget):
    """Pick (batch_tile, k_tile, weight_buffer_count) under the VMEM budget."""
    # K (contraction) tile: keep the fused (Dp, 3Dp) bf16 weight pinned and
    # single-buffered when it fits; otherwise K-tile it (double-buffered).
    w_pinned_bytes = Dp * 3 * Dp * 2
    if w_pinned_bytes <= 0.4 * vmem_budget:
        tk, w_bufs = Dp, 1
    else:
        tk, w_bufs = Dp, 2
        while tk > 128 and 2 * tk * 3 * Dp * 2 > 0.4 * vmem_budget:
            nxt = tk // 2
            if nxt % 128 != 0 or Dp % nxt != 0:
                break
            tk = nxt

    # Batch tile: biggest that fits VMEM; guarantee >= 2 grid steps when
    # B8 >= 16 so the "parallel" batch axis can shard across both v7x TCs.
    tb = 8
    for cand in (1024, 512, 256, 128, 64, 32, 16, 8):
        if cand > B8:
            continue
        if B8 >= 16 and (B8 + cand - 1) // cand < 2:
            continue
        need = (2 * cand * tk * 2                 # x tile (bf16, dbl-buffered)
                + w_bufs * tk * 3 * Dp * 2        # fused weight (bf16)
                + 2 * 2 * cand * Dp * out_bytes   # z0 + ctx tiles (dbl-buffered)
                + cand * 3 * Dp * 4               # f32 accumulator scratch
                + 8 * Dp * 4)                     # bias + eps (padded rows)
        if need <= vmem_budget:
            tb = cand
            break
    return tb, tk, w_bufs


def encoder_forward(x, params, eps, out_dtype=jnp.float32):
    """x: (B, D) float32; params: dict of f32 weights/biases; eps: (D,) f32."""
    B, D = x.shape
    Dp = _round_up(D, 128)
    out_bytes = int(np.dtype(out_dtype).itemsize)

    vmem_budget = _vmem_budget_bytes()
    TB, TK, _ = _choose_tiles(_round_up(B, 8), Dp, out_bytes, vmem_budget)
    B_pad = _round_up(B, TB)
    nb = B_pad // TB
    nk = Dp // TK

    # ---- Wrapper-side packing / padding (cheap XLA ops, done once). --------
    # Pad every projection to Dp so the kernel's column slices stay 128-lane
    # aligned for any D, then concatenate into one (Dp, 3Dp) bf16 weight.
    def pad_w(w):
        return jnp.pad(w, ((0, Dp - D), (0, Dp - D)))

    def pad_b(b):
        return jnp.pad(b.reshape(1, -1), ((0, 0), (0, Dp - D)))

    w_cat = jnp.concatenate(
        [pad_w(params["w_mu"]), pad_w(params["w_sigma"]), pad_w(params["w_ctx"])],
        axis=1).astype(jnp.bfloat16)
    b_cat = jnp.concatenate(
        [pad_b(params["b_mu"]), pad_b(params["b_sigma"]), pad_b(params["b_ctx"])],
        axis=1).astype(jnp.float32)
    eps2d = jnp.pad(eps.reshape(1, -1), ((0, 0), (0, Dp - D))).astype(jnp.float32)

    # bf16 activations at the pallas_call boundary halve the x HBM read.
    x_p = jnp.pad(x, ((0, B_pad - B), (0, Dp - D))).astype(jnp.bfloat16)

    cost = pl.CostEstimate(
        flops=2 * B_pad * Dp * (3 * Dp),
        transcendentals=B_pad * Dp,
        bytes_accessed=(B_pad * Dp * 2            # x in (bf16)
                        + Dp * 3 * Dp * 2         # fused weights (bf16)
                        + 4 * Dp * 4              # biases + eps
                        + 2 * B_pad * Dp * out_bytes),  # z0, ctx out
    )

    def run(use_single_buffer):
        if use_single_buffer:
            if nk == 1:
                w_spec = pl.BlockSpec((TK, 3 * Dp), lambda i, k: (k, 0),
                                      pipeline_mode=pl.Buffered(1))
            else:
                w_spec = pl.BlockSpec((TK, 3 * Dp), lambda i, k: (k, 0))
            b_spec = pl.BlockSpec((1, 3 * Dp), lambda i, k: (0, 0),
                                  pipeline_mode=pl.Buffered(1))
            e_spec = pl.BlockSpec((1, Dp), lambda i, k: (0, 0),
                                  pipeline_mode=pl.Buffered(1))
        else:
            w_spec = pl.BlockSpec((TK, 3 * Dp), lambda i, k: (k, 0))
            b_spec = pl.BlockSpec((1, 3 * Dp), lambda i, k: (0, 0))
            e_spec = pl.BlockSpec((1, Dp), lambda i, k: (0, 0))

        return pl.pallas_call(
            encoder_kernel,
            out_shape=(
                jax.ShapeDtypeStruct((B_pad, Dp), out_dtype),
                jax.ShapeDtypeStruct((B_pad, Dp), out_dtype),
            ),
            grid_spec=pltpu.PrefetchScalarGridSpec(
                num_scalar_prefetch=0,
                grid=(nb, nk),
                in_specs=[
                    pl.BlockSpec((TB, TK), lambda i, k: (i, k)),   # x tile
                    w_spec,                                        # fused W
                    b_spec,                                        # fused bias
                    e_spec,                                        # eps
                ],
                out_specs=(
                    pl.BlockSpec((TB, Dp), lambda i, k: (i, 0)),   # z0 tile
                    pl.BlockSpec((TB, Dp), lambda i, k: (i, 0)),   # context_h
                ),
                scratch_shapes=[pltpu.VMEM((TB, 3 * Dp), jnp.float32)],
            ),
            compiler_params=pltpu.CompilerParams(
                dimension_semantics=("parallel", "arbitrary"),
                vmem_limit_bytes=vmem_budget,
            ),
            cost_estimate=cost,
        )(x_p, w_cat, b_cat, eps2d)

    try:
        z0_p, ctx_p = run(True)
    except Exception:
        # Fallback: identical kernel without the Buffered(1) pipeline hint.
        z0_p, ctx_p = run(False)

    return z0_p[:B, :D], ctx_p[:B, :D]


def init_encoder_params(key, x_dim):
    """Deterministic init matching Encoder.__init__ shapes.

    fc_* : Linear(x_dim, z_dim) with z_dim == x_dim.
    Weights: Xavier normal (std = sqrt(2 / (fan_in + fan_out))).
    Biases: PyTorch Linear default uniform(-1/sqrt(fan_in), 1/sqrt(fan_in)).
    Weights stored transposed as (D_in, D_out) for the x @ W convention.
    """
    D = x_dim
    keys = jax.random.split(key, 6)
    xavier_std = jnp.sqrt(2.0 / (D + D))
    bound = 1.0 / jnp.sqrt(D)
    return {
        "w_mu":    jax.random.normal(keys[0], (D, D), jnp.float32) * xavier_std,
        "b_mu":    jax.random.uniform(keys[1], (1, D), jnp.float32, -bound, bound),
        "w_sigma": jax.random.normal(keys[2], (D, D), jnp.float32) * xavier_std,
        "b_sigma": jax.random.uniform(keys[3], (1, D), jnp.float32, -bound, bound),
        "w_ctx":   jax.random.normal(keys[4], (D, D), jnp.float32) * xavier_std,
        "b_ctx":   jax.random.uniform(keys[5], (1, D), jnp.float32, -bound, bound),
    }


def reference_forward_f32(x, params, eps):
    mu = x @ params["w_mu"] + params["b_mu"]
    sigma = jnp.exp(x @ params["w_sigma"] + params["b_sigma"])
    ctx = x @ params["w_ctx"] + params["b_ctx"]
    z0 = sigma * eps.reshape(1, -1) + mu
    return z0, ctx


def reference_forward_bf16(x, params, eps):
    """Reference with the same bf16-input / f32-accumulation matmul precision
    as the kernel (weights + activations cast to bf16)."""
    xb = x.astype(jnp.bfloat16)
    dot = lambda w: jnp.dot(xb, w.astype(jnp.bfloat16),
                            preferred_element_type=jnp.float32)
    mu = dot(params["w_mu"]) + params["b_mu"]
    sigma = jnp.exp(dot(params["w_sigma"]) + params["b_sigma"])
    ctx = dot(params["w_ctx"]) + params["b_ctx"]
    z0 = sigma * eps.reshape(1, -1) + mu
    return z0, ctx


if __name__ == "__main__":
    B, D = 16, 128  # batch, x_dim (= z_dim); small, tile-friendly demo shapes

    key = jax.random.PRNGKey(0)
    k_params, k_x, k_eps = jax.random.split(key, 3)

    params = init_encoder_params(k_params, D)
    x = jax.random.normal(k_x, (B, D), jnp.float32)
    # eps = torch.FloatTensor(z_dim).normal_() -> deterministic normal noise here
    eps = jax.random.normal(k_eps, (D,), jnp.float32)

    z0, ctx = encoder_forward(x, params, eps)
    z0 = jax.block_until_ready(z0)
    ctx = jax.block_until_ready(ctx)

    assert z0.shape == (B, D) and ctx.shape == (B, D)

    # Primary correctness check against a precision-matched (bf16-matmul) reference.
    z0_ref, ctx_ref = reference_forward_bf16(x, params, eps)
    assert jnp.allclose(z0, z0_ref, atol=1e-2, rtol=1e-2)
    assert jnp.allclose(ctx, ctx_ref, atol=1e-2, rtol=1e-2)

    # Informational: deviation vs full-f32 reference (bf16 weights -> ~1e-2 rel).
    z0_f32, ctx_f32 = reference_forward_f32(x, params, eps)
    _ = float(jnp.max(jnp.abs(z0 - z0_f32))), float(jnp.max(jnp.abs(ctx - ctx_f32)))

    print("KERNEL_OK")
</pallas_src>

<mosaic_0001>
module attributes {stable_mosaic.version = 11 : i64} {
  func.func @encoder_kernel(%arg0: i32, %arg1: i32, %arg2: memref<8x128xbf16, #tpu.memory_space<vmem>>, %arg3: memref<128x384xbf16, #tpu.memory_space<vmem>>, %arg4: memref<1x384xf32, #tpu.memory_space<vmem>>, %arg5: memref<1x128xf32, #tpu.memory_space<vmem>>, %arg6: memref<8x128xf32, #tpu.memory_space<vmem>>, %arg7: memref<8x128xf32, #tpu.memory_space<vmem>>, %arg8: memref<8x384xf32, #tpu.memory_space<vmem>>) attributes {dimension_semantics = [#tpu.dimension_semantics<parallel>, #tpu.dimension_semantics<arbitrary>], iteration_bounds = array<i64: 2, 1>, scalar_prefetch = 0 : i64, scratch_operands = 1 : i64, tpu.core_type = #tpu.core_type<tc>, window_params = [{transform_indices = @transform_0, window_bounds = array<i64: 8, 128>}, {pipeline_mode = #tpu.pipeline_mode<synchronous>, transform_indices = @transform_1, window_bounds = array<i64: 128, 384>}, {pipeline_mode = #tpu.pipeline_mode<synchronous>, transform_indices = @transform_2, window_bounds = array<i64: 1, 384>}, {pipeline_mode = #tpu.pipeline_mode<synchronous>, transform_indices = @transform_3, window_bounds = array<i64: 1, 128>}, {transform_indices = @transform_4, window_bounds = array<i64: 8, 128>}, {transform_indices = @transform_5, window_bounds = array<i64: 8, 128>}]} {
    %c0_i32 = arith.constant 0 : i32
    %0 = arith.cmpi eq, %arg1, %c0_i32 : i32
    %1 = arith.extui %0 : i1 to i32
    %c0_i32_0 = arith.constant 0 : i32
    %2 = arith.cmpi ne, %1, %c0_i32_0 : i32
    scf.if %2 {
      %cst_10 = arith.constant 0.000000e+00 : f32
      %12 = vector.broadcast %cst_10 : f32 to vector<8x384xf32>
      %c0_11 = arith.constant 0 : index
      %c0_12 = arith.constant 0 : index
      %13 = vector.load %arg8[%c0_11, %c0_12] : memref<8x384xf32, #tpu.memory_space<vmem>>, vector<8x384xf32>
      tpu.vector_store %arg8[%c0_11, %c0_12], %12 {strides = array<i32>} : memref<8x384xf32, #tpu.memory_space<vmem>>, vector<8x384xf32>,
    } else {
    }
    %c0 = arith.constant 0 : index
    %c0_1 = arith.constant 0 : index
    %3 = vector.load %arg8[%c0, %c0_1] : memref<8x384xf32, #tpu.memory_space<vmem>>, vector<8x384xf32>
    %c0_2 = arith.constant 0 : index
    %c0_3 = arith.constant 0 : index
    %4 = vector.load %arg2[%c0_2, %c0_3] : memref<8x128xbf16, #tpu.memory_space<vmem>>, vector<8x128xbf16>
    %c0_4 = arith.constant 0 : index
    %c0_5 = arith.constant 0 : index
    %5 = vector.load %arg3[%c0_4, %c0_5] : memref<128x384xbf16, #tpu.memory_space<vmem>>, vector<128x384xbf16>
    %cst = arith.constant dense<0.000000e+00> : vector<8x384xf32>
    %6 = tpu.matmul %4, %5, %cst {dimension_numbers = #tpu.dot_dimension_numbers<[1], [0], [0], [1], [0, 0, 1, 1], [], []>} : vector<8x128xbf16>, vector<128x384xbf16>, vector<8x384xf32> -> vector<8x384xf32>
    %7 = arith.addf %3, %6 : vector<8x384xf32>
    %c0_6 = arith.constant 0 : index
    %c0_7 = arith.constant 0 : index
    %8 = vector.load %arg8[%c0_6, %c0_7] : memref<8x384xf32, #tpu.memory_space<vmem>>, vector<8x384xf32>
    tpu.vector_store %arg8[%c0_6, %c0_7], %7 {strides = array<i32>} : memref<8x384xf32, #tpu.memory_space<vmem>>, vector<8x384xf32>,
    %c0_i32_8 = arith.constant 0 : i32
    %9 = arith.cmpi eq, %arg1, %c0_i32_8 : i32
    %10 = arith.extui %9 : i1 to i32
    %c0_i32_9 = arith.constant 0 : i32
    %11 = arith.cmpi ne, %10, %c0_i32_9 : i32
    scf.if %11 {
      %c0_10 = arith.constant 0 : index
      %c0_11 = arith.constant 0 : index
      %12 = vector.load %arg8[%c0_10, %c0_11] : memref<8x384xf32, #tpu.memory_space<vmem>>, vector<8x384xf32>
      %c0_12 = arith.constant 0 : index
      %c0_13 = arith.constant 0 : index
      %13 = vector.load %arg4[%c0_12, %c0_13] : memref<1x384xf32, #tpu.memory_space<vmem>>, vector<1x384xf32>
      %14 = vector.broadcast %13 : vector<1x384xf32> to vector<8x384xf32>
      %15 = arith.addf %12, %14 : vector<8x384xf32>
      %16 = vector.extract_strided_slice %15 {offsets = [0, 0], sizes = [8, 128], strides = [1, 1]} : vector<8x384xf32> to vector<8x128xf32>
      %17 = vector.extract_strided_slice %15 {offsets = [0, 128], sizes = [8, 128], strides = [1, 1]} : vector<8x384xf32> to vector<8x128xf32>
      %18 = math.exp %17 : vector<8x128xf32>
      %19 = vector.extract_strided_slice %15 {offsets = [0, 256], sizes = [8, 128], strides = [1, 1]} : vector<8x384xf32> to vector<8x128xf32>
      %c0_14 = arith.constant 0 : index
      %c0_15 = arith.constant 0 : index
      %20 = vector.load %arg5[%c0_14, %c0_15] : memref<1x128xf32, #tpu.memory_space<vmem>>, vector<1x128xf32>
      %21 = vector.broadcast %20 : vector<1x128xf32> to vector<8x128xf32>
      %22 = arith.mulf %18, %21 : vector<8x128xf32>
      %23 = arith.addf %22, %16 : vector<8x128xf32>
      %c0_16 = arith.constant 0 : index
      %c0_17 = arith.constant 0 : index
      %24 = vector.load %arg6[%c0_16, %c0_17] : memref<8x128xf32, #tpu.memory_space<vmem>>, vector<8x128xf32>
      tpu.vector_store %arg6[%c0_16, %c0_17], %23 {strides = array<i32>} : memref<8x128xf32, #tpu.memory_space<vmem>>, vector<8x128xf32>,
      %c0_18 = arith.constant 0 : index
      %c0_19 = arith.constant 0 : index
      %25 = vector.load %arg7[%c0_18, %c0_19] : memref<8x128xf32, #tpu.memory_space<vmem>>, vector<8x128xf32>
      tpu.vector_store %arg7[%c0_18, %c0_19], %19 {strides = array<i32>} : memref<8x128xf32, #tpu.memory_space<vmem>>, vector<8x128xf32>,
    } else {
    }
    return
  }
  func.func @transform_0(%arg0: i32, %arg1: i32) -> (i32, i32) {
    %c0_i32 = arith.constant 0 : i32
    return %arg0, %arg1 : i32, i32
  }
  func.func @transform_1(%arg0: i32, %arg1: i32) -> (i32, i32) {
    %c0_i32 = arith.constant 0 : i32
    %c0_i32_0 = arith.constant 0 : i32
    return %arg1, %c0_i32 : i32, i32
  }
  func.func @transform_2(%arg0: i32, %arg1: i32) -> (i32, i32) {
    %c0_i32 = arith.constant 0 : i32
    %c0_i32_0 = arith.constant 0 : i32
    %c0_i32_1 = arith.constant 0 : i32
    return %c0_i32, %c0_i32_0 : i32, i32
  }
  func.func @transform_3(%arg0: i32, %arg1: i32) -> (i32, i32) {
    %c0_i32 = arith.constant 0 : i32
    %c0_i32_0 = arith.constant 0 : i32
    %c0_i32_1 = arith.constant 0 : i32
    return %c0_i32, %c0_i32_0 : i32, i32
  }
  func.func @transform_4(%arg0: i32, %arg1: i32) -> (i32, i32) {
    %c0_i32 = arith.constant 0 : i32
    %c0_i32_0 = arith.constant 0 : i32
    return %arg0, %c0_i32 : i32, i32
  }
  func.func @transform_5(%arg0: i32, %arg1: i32) -> (i32, i32) {
    %c0_i32 = arith.constant 0 : i32
    %c0_i32_0 = arith.constant 0 : i32
    return %arg0, %c0_i32 : i32, i32
  }
}

module attributes {stable_mosaic.version = 11 : i64} {
  func.func @encoder_kernel(%arg0: i32, %arg1: i32, %arg2: memref<8x128xbf16, #tpu.memory_space<vmem>>, %arg3: memref<128x384xbf16, #tpu.memory_space<vmem>>, %arg4: memref<1x384xf32, #tpu.memory_space<vmem>>, %arg5: memref<1x128xf32, #tpu.memory_space<vmem>>, %arg6: memref<8x128xf32, #tpu.memory_space<vmem>>, %arg7: memref<8x128xf32, #tpu.memory_space<vmem>>, %arg8: memref<8x384xf32, #tpu.memory_space<vmem>>) attributes {dimension_semantics = [#tpu.dimension_semantics<parallel>, #tpu.dimension_semantics<arbitrary>], iteration_bounds = array<i64: 2, 1>, scalar_prefetch = 0 : i64, scratch_operands = 1 : i64, tpu.core_type = #tpu.core_type<tc>, window_params = [{transform_indices = @transform_0, window_bounds = array<i64: 8, 128>}, {transform_indices = @transform_1, window_bounds = array<i64: 128, 384>}, {pipeline_mode = #tpu.pipeline_mode<synchronous>, transform_indices = @transform_2, window_bounds = array<i64: 1, 384>}, {pipeline_mode = #tpu.pipeline_mode<synchronous>, transform_indices = @transform_3, window_bounds = array<i64: 1, 128>}, {transform_indices = @transform_4, window_bounds = array<i64: 8, 128>}, {transform_indices = @transform_5, window_bounds = array<i64: 8, 128>}]} {
    %c0_i32 = arith.constant 0 : i32
    %0 = arith.cmpi eq, %arg1, %c0_i32 : i32
    %1 = arith.extui %0 : i1 to i32
    %c0_i32_0 = arith.constant 0 : i32
    %2 = arith.cmpi ne, %1, %c0_i32_0 : i32
    scf.if %2 {
      %cst_10 = arith.constant 0.000000e+00 : f32
      %12 = vector.broadcast %cst_10 : f32 to vector<8x384xf32>
      %c0_11 = arith.constant 0 : index
      %c0_12 = arith.constant 0 : index
      %13 = vector.load %arg8[%c0_11, %c0_12] : memref<8x384xf32, #tpu.memory_space<vmem>>, vector<8x384xf32>
      tpu.vector_store %arg8[%c0_11, %c0_12], %12 {strides = array<i32>} : memref<8x384xf32, #tpu.memory_space<vmem>>, vector<8x384xf32>,
    } else {
    }
    %c0 = arith.constant 0 : index
    %c0_1 = arith.constant 0 : index
    %3 = vector.load %arg8[%c0, %c0_1] : memref<8x384xf32, #tpu.memory_space<vmem>>, vector<8x384xf32>
    %c0_2 = arith.constant 0 : index
    %c0_3 = arith.constant 0 : index
    %4 = vector.load %arg2[%c0_2, %c0_3] : memref<8x128xbf16, #tpu.memory_space<vmem>>, vector<8x128xbf16>
    %c0_4 = arith.constant 0 : index
    %c0_5 = arith.constant 0 : index
    %5 = vector.load %arg3[%c0_4, %c0_5] : memref<128x384xbf16, #tpu.memory_space<vmem>>, vector<128x384xbf16>
    %cst = arith.constant dense<0.000000e+00> : vector<8x384xf32>
    %6 = tpu.matmul %4, %5, %cst {dimension_numbers = #tpu.dot_dimension_numbers<[1], [0], [0], [1], [0, 0, 1, 1], [], []>} : vector<8x128xbf16>, vector<128x384xbf16>, vector<8x384xf32> -> vector<8x384xf32>
    %7 = arith.addf %3, %6 : vector<8x384xf32>
    %c0_6 = arith.constant 0 : index
    %c0_7 = arith.constant 0 : index
    %8 = vector.load %arg8[%c0_6, %c0_7] : memref<8x384xf32, #tpu.memory_space<vmem>>, vector<8x384xf32>
    tpu.vector_store %arg8[%c0_6, %c0_7], %7 {strides = array<i32>} : memref<8x384xf32, #tpu.memory_space<vmem>>, vector<8x384xf32>,
    %c0_i32_8 = arith.constant 0 : i32
    %9 = arith.cmpi eq, %arg1, %c0_i32_8 : i32
    %10 = arith.extui %9 : i1 to i32
    %c0_i32_9 = arith.constant 0 : i32
    %11 = arith.cmpi ne, %10, %c0_i32_9 : i32
    scf.if %11 {
      %c0_10 = arith.constant 0 : index
      %c0_11 = arith.constant 0 : index
      %12 = vector.load %arg8[%c0_10, %c0_11] : memref<8x384xf32, #tpu.memory_space<vmem>>, vector<8x384xf32>
      %c0_12 = arith.constant 0 : index
      %c0_13 = arith.constant 0 : index
      %13 = vector.load %arg4[%c0_12, %c0_13] : memref<1x384xf32, #tpu.memory_space<vmem>>, vector<1x384xf32>
      %14 = vector.broadcast %13 : vector<1x384xf32> to vector<8x384xf32>
      %15 = arith.addf %12, %14 : vector<8x384xf32>
      %16 = vector.extract_strided_slice %15 {offsets = [0, 0], sizes = [8, 128], strides = [1, 1]} : vector<8x384xf32> to vector<8x128xf32>
      %17 = vector.extract_strided_slice %15 {offsets = [0, 128], sizes = [8, 128], strides = [1, 1]} : vector<8x384xf32> to vector<8x128xf32>
      %18 = math.exp %17 : vector<8x128xf32>
      %19 = vector.extract_strided_slice %15 {offsets = [0, 256], sizes = [8, 128], strides = [1, 1]} : vector<8x384xf32> to vector<8x128xf32>
      %c0_14 = arith.constant 0 : index
      %c0_15 = arith.constant 0 : index
      %20 = vector.load %arg5[%c0_14, %c0_15] : memref<1x128xf32, #tpu.memory_space<vmem>>, vector<1x128xf32>
      %21 = vector.broadcast %20 : vector<1x128xf32> to vector<8x128xf32>
      %22 = arith.mulf %18, %21 : vector<8x128xf32>
      %23 = arith.addf %22, %16 : vector<8x128xf32>
      %c0_16 = arith.constant 0 : index
      %c0_17 = arith.constant 0 : index
      %24 = vector.load %arg6[%c0_16, %c0_17] : memref<8x128xf32, #tpu.memory_space<vmem>>, vector<8x128xf32>
      tpu.vector_store %arg6[%c0_16, %c0_17], %23 {strides = array<i32>} : memref<8x128xf32, #tpu.memory_space<vmem>>, vector<8x128xf32>,
      %c0_18 = arith.constant 0 : index
      %c0_19 = arith.constant 0 : index
      %25 = vector.load %arg7[%c0_18, %c0_19] : memref<8x128xf32, #tpu.memory_space<vmem>>, vector<8x128xf32>
      tpu.vector_store %arg7[%c0_18, %c0_19], %19 {strides = array<i32>} : memref<8x128xf32, #tpu.memory_space<vmem>>, vector<8x128xf32>,
    } else {
    }
    return
  }
  func.func @transform_0(%arg0: i32, %arg1: i32) -> (i32, i32) {
    %c0_i32 = arith.constant 0 : i32
    return %arg0, %arg1 : i32, i32
  }
  func.func @transform_1(%arg0: i32, %arg1: i32) -> (i32, i32) {
    %c0_i32 = arith.constant 0 : i32
    %c0_i32_0 = arith.constant 0 : i32
    return %arg1, %c0_i32 : i32, i32
  }
  func.func @transform_2(%arg0: i32, %arg1: i32) -> (i32, i32) {
    %c0_i32 = arith.constant 0 : i32
    %c0_i32_0 = arith.constant 0 : i32
    %c0_i32_1 = arith.constant 0 : i32
    return %c0_i32, %c0_i32_0 : i32, i32
  }
  func.func @transform_3(%arg0: i32, %arg1: i32) -> (i32, i32) {
    %c0_i32 = arith.constant 0 : i32
    %c0_i32_0 = arith.constant 0 : i32
    %c0_i32_1 = arith.constant 0 : i32
    return %c0_i32, %c0_i32_0 : i32, i32
  }
  func.func @transform_4(%arg0: i32, %arg1: i32) -> (i32, i32) {
    %c0_i32 = arith.constant 0 : i32
    %c0_i32_0 = arith.constant 0 : i32
    return %arg0, %c0_i32 : i32, i32
  }
  func.func @transform_5(%arg0: i32, %arg1: i32) -> (i32, i32) {
    %c0_i32 = arith.constant 0 : i32
    %c0_i32_0 = arith.constant 0 : i32
    return %arg0, %c0_i32 : i32, i32
  }
}

</mosaic_0001>

<llo_original>
// kernel: tpu_custom_call.1
$region0: #{tpu_custom_call.1}
  #allocation0 [shape = 'u32[]', space=smem, size = 0x4, offset = 0x4, fixed_abs, tag = 'smem constant byte address 0x4 - core index']
  #allocation1 [shape = 'u32[72,128]{1,0:T(1,128)}', space=vmem, size = 0x9000, scoped, tag = 'internal scratch']
  #allocation2 [shape = 'f32[8,384]{1,0:T(8,128)}', space=vmem, size = 0x3000, scoped, tag = 'scratch operand']
  %s0 = inlined_call_operand.hbm [shape: bf16[16,128], index: 0, kind: input, shape index: {}]
  %s1 = inlined_call_operand.hbm [shape: bf16[128,384], index: 1, kind: input, shape index: {}]
  %s2 = inlined_call_operand.hbm [shape: f32[1,384], index: 2, kind: input, shape index: {}]
  %s3 = inlined_call_operand.vmem [shape: f32[1,128], index: 3, kind: input, shape index: {}]
  %s4 = inlined_call_operand.hbm [shape: f32[16,128], index: 4, kind: output, shape index: {0}]
  %s5 = inlined_call_operand.hbm [shape: f32[16,128], index: 5, kind: output, shape index: {1}]
  %6 = xla_tuple %s4, %s5
  %s7 = sld [smem:[#allocation0]]
  $region77: #{tpu_custom_call.1} parent=0
    _
  %s9 = ssub.s32 1, %s7
  %s10 = scalar_select 0, %s9, %s7
  $region1: #{tpu_custom_call.1} parent=0
    #allocation3 [shape = 'u8[4096]{0}', space=vmem, size = 0x1000, scoped, tag = 'input window, operand 0']
    #allocation4 [shape = 's32[2]{0}', space=sflag, size = 0x8, scoped, tag = 'scoped memory for tpu_custom_call.1']
    #allocation5 [shape = 's32[2]{0}', space=sflag, size = 0x8, scoped, tag = 'scoped memory for tpu_custom_call.1']
    #allocation6 [shape = 'u8[98304]{0}', space=vmem, size = 0x18000, scoped, tag = 'input window, operand 1, single buffered']
    #allocation7 [shape = 's32[1]{0}', space=sflag, size = 0x4, scoped, tag = 'scoped memory for tpu_custom_call.1']
    #allocation8 [shape = 'u8[1536]{0}', space=vmem, size = 0x800, scoped, tag = 'input window, operand 2, single buffered']
    #allocation9 [shape = 'u8[8192]{0}', space=vmem, size = 0x2000, scoped, tag = 'output window, operand 0']
    #allocation10 [shape = 'u8[8192]{0}', space=vmem, size = 0x2000, scoped, tag = 'output window, operand 1']
    #allocation11 [shape = 's32[2]{0}', space=sflag, size = 0x8, scoped, tag = 'scoped memory for tpu_custom_call.1']
    %11 = vsyncpa [#allocation4], 0
    %s12 = scalar_lea.sflag [#allocation4], 1
    %13 = vsyncpa %s12, 0
    %14 = vsyncpa [#allocation7], 0
    %15 = vsyncpa [#allocation5], 0
    %s16 = scalar_lea.sflag [#allocation5], 1
    %17 = vsyncpa %s16, 0
    %18 = vsyncpa [#allocation11], 0
    %s19 = scalar_lea.sflag [#allocation11], 1
    %20 = vsyncpa %s19, 0
    loop: start=0, step=1, limit=4
    $region2: #{tpu_custom_call.1} parent=1 // loop_pre_header
      _
    $region3: #{tpu_custom_call.1} parent=1 // loop_header
      %s22 = sphi 0, %s26
      %p23 = scmp.ge.s32.totalorder %s22, 4
      %s29 = sphi 0, %s41
      %s30 = sphi 0, %s37
      %s31 = sphi 0, %s29
      %s32 = sphi 0, %s30
      %s33 = sphi 0, %s31
      %s34 = sphi 0, %s32
      %s46 = sphi 0, %s48
      %s49 = sphi 0, %s46
      %s50 = sphi 0, %s49
      %s66 = sphi 0, %s50
      %s72 = sphi 0, %s74
      %s75 = sphi 0, %s72
      %s76 = sphi 0, %s75
      %s92 = sphi 0, %s76
      %s96 = sphi 0, %s96
      %s98 = sphi 0, %s96
      %s99 = sphi 0, %s98
      %s113 = sphi 0, %s99
      %s117 = sphi 0, %s117
      %s119 = sphi 0, %s117
      %s120 = sphi 0, %s119
      %s134 = sphi 0, %s120
      %s140 = sphi 0, %s142
      %s143 = sphi 0, %s140
      %s144 = sphi 0, %s143
      %s160 = sphi 0, %s144
      %s166 = sphi 0, %s168
      %s169 = sphi 0, %s166
      %s170 = sphi 0, %s169
      %s186 = sphi 0, %s170
    $region4: #{tpu_custom_call.1} parent=1 // loop_header_branch
      %25 = sbr.rel (%p23) target = $region8
    $region5: #{tpu_custom_call.1} parent=1 // loop_body
      %s27 = ssub.s32 %s22, 1
      %s28 = ssub.s32 %s22, 2
      %s35 = sadd.s32 1, %s30
      %p36 = scmp.ge.s32.totalorder %s35, 1
      %s37 = scalar_select %p36, 0, %s35
      %s38 = sadd.s32 1, %s29
      %s39 = scalar_select %p36, %s38, %s29
      %p40 = scmp.ge.s32.totalorder %s39, 2
      %s41 = scalar_select %p40, 0, %s39
      %s42 = ssub.s32 %s29, %s41
      %s43 = ssub.s32 %s30, %s37
      %s44 = sor.u32 %s42, %s43
      %p45 = scmp.eq.s32.totalorder %s44, 0
      %s47 = sadd.s32 %s46, 1
      %s48 = scalar_select %p45, %s46, %s47
      %p51 = pneg %p45
      %p52 = scmp.eq.s32.totalorder %s22, 1
      %p53 = por %p51, %p52
      %p54 = scmp.ne.s32.totalorder %s46, %s49
      %p55 = scmp.eq.s32.totalorder %s22, 0
      %p56 = por %p54, %p55
      %p57 = scmp.ne.s32.totalorder %s46, %s49
      %p58 = scmp.eq.s32.totalorder %s27, 1
      %p59 = por %p57, %p58
      %p60 = scmp.ne.s32.totalorder %s49, %s50
      %p61 = scmp.eq.s32.totalorder %s27, 0
      %p62 = por %p60, %p61
      %p63 = scmp.ne.s32.totalorder %s49, %s50
      %p64 = scmp.eq.s32.totalorder %s28, 1
      %p65 = por %p63, %p64
      %p67 = scmp.ne.s32.totalorder %s50, %s66
      %p68 = scmp.eq.s32.totalorder %s28, 0
      %p69 = por %p67, %p68
      %s70 = ssub.s32 %s30, %s37
      %p71 = scmp.eq.s32.totalorder %s70, 0
      %s73 = sadd.s32 %s72, 1
      %s74 = scalar_select %p71, %s72, %s73
      %p77 = pneg %p71
      %p78 = scmp.eq.s32.totalorder %s22, 1
      %p79 = por %p77, %p78
      %p80 = scmp.ne.s32.totalorder %s72, %s75
      %p81 = scmp.eq.s32.totalorder %s22, 0
      %p82 = por %p80, %p81
      %p83 = scmp.ne.s32.totalorder %s72, %s75
      %p84 = scmp.eq.s32.totalorder %s27, 1
      %p85 = por %p83, %p84
      %p86 = scmp.ne.s32.totalorder %s75, %s76
      %p87 = scmp.eq.s32.totalorder %s27, 0
      %p88 = por %p86, %p87
      %p89 = scmp.ne.s32.totalorder %s75, %s76
      %p90 = scmp.eq.s32.totalorder %s28, 1
      %p91 = por %p89, %p90
      %p93 = scmp.ne.s32.totalorder %s76, %s92
      %p94 = scmp.eq.s32.totalorder %s28, 0
      %p95 = por %p93, %p94
      %s97 = sadd.s32 %s96, 1
      %p100 = scmp.eq.s32.totalorder %s22, 1
      %p101 = scmp.ne.s32.totalorder %s96, %s98
      %p102 = scmp.eq.s32.totalorder %s22, 0
      %p103 = por %p101, %p102
      %p104 = scmp.ne.s32.totalorder %s96, %s98
      %p105 = scmp.eq.s32.totalorder %s27, 1
      %p106 = por %p104, %p105
      %p107 = scmp.ne.s32.totalorder %s98, %s99
      %p108 = scmp.eq.s32.totalorder %s27, 0
      %p109 = por %p107, %p108
      %p110 = scmp.ne.s32.totalorder %s98, %s99
      %p111 = scmp.eq.s32.totalorder %s28, 1
      %p112 = por %p110, %p111
      %p114 = scmp.ne.s32.totalorder %s99, %s113
      %p115 = scmp.eq.s32.totalorder %s28, 0
      %p116 = por %p114, %p115
      %s118 = sadd.s32 %s117, 1
      %p121 = scmp.eq.s32.totalorder %s22, 1
      %p122 = scmp.ne.s32.totalorder %s117, %s119
      %p123 = scmp.eq.s32.totalorder %s22, 0
      %p124 = por %p122, %p123
      %p125 = scmp.ne.s32.totalorder %s117, %s119
      %p126 = scmp.eq.s32.totalorder %s27, 1
      %p127 = por %p125, %p126
      %p128 = scmp.ne.s32.totalorder %s119, %s120
      %p129 = scmp.eq.s32.totalorder %s27, 0
      %p130 = por %p128, %p129
      %p131 = scmp.ne.s32.totalorder %s119, %s120
      %p132 = scmp.eq.s32.totalorder %s28, 1
      %p133 = por %p131, %p132
      %p135 = scmp.ne.s32.totalorder %s120, %s134
      %p136 = scmp.eq.s32.totalorder %s28, 0
      %p137 = por %p135, %p136
      %s138 = ssub.s32 %s29, %s41
      %p139 = scmp.eq.s32.totalorder %s138, 0
      %s141 = sadd.s32 %s140, 1
      %s142 = scalar_select %p139, %s140, %s141
      %p145 = pneg %p139
      %p146 = scmp.eq.s32.totalorder %s22, 1
      %p147 = por %p145, %p146
      %p148 = scmp.ne.s32.totalorder %s140, %s143
      %p149 = scmp.eq.s32.totalorder %s22, 0
      %p150 = por %p148, %p149
      %p151 = scmp.ne.s32.totalorder %s140, %s143
      %p152 = scmp.eq.s32.totalorder %s27, 1
      %p153 = por %p151, %p152
      %p154 = scmp.ne.s32.totalorder %s143, %s144
      %p155 = scmp.eq.s32.totalorder %s27, 0
      %p156 = por %p154, %p155
      %p157 = scmp.ne.s32.totalorder %s143, %s144
      %p158 = scmp.eq.s32.totalorder %s28, 1
      %p159 = por %p157, %p158
      %p161 = scmp.ne.s32.totalorder %s144, %s160
      %p162 = scmp.eq.s32.totalorder %s28, 0
      %p163 = por %p161, %p162
      %s164 = ssub.s32 %s29, %s41
      %p165 = scmp.eq.s32.totalorder %s164, 0
      %s167 = sadd.s32 %s166, 1
      %s168 = scalar_select %p165, %s166, %s167
      %p171 = pneg %p165
      %p172 = scmp.eq.s32.totalorder %s22, 1
      %p173 = por %p171, %p172
      %p174 = scmp.ne.s32.totalorder %s166, %s169
      %p175 = scmp.eq.s32.totalorder %s22, 0
      %p176 = por %p174, %p175
      %p177 = scmp.ne.s32.totalorder %s166, %s169
      %p178 = scmp.eq.s32.totalorder %s27, 1
      %p179 = por %p177, %p178
      %p180 = scmp.ne.s32.totalorder %s169, %s170
      %p181 = scmp.eq.s32.totalorder %s27, 0
      %p182 = por %p180, %p181
      %p183 = scmp.ne.s32.totalorder %s169, %s170
      %p184 = scmp.eq.s32.totalorder %s28, 1
      %p185 = por %p183, %p184
      %p187 = scmp.ne.s32.totalorder %s170, %s186
      %p188 = scmp.eq.s32.totalorder %s28, 0
      %p189 = por %p187, %p188
      %p190 = scmp.le.s32.totalorder 1, %s22
      %p191 = scmp.lt.s32.totalorder %s22, 3
      %p192 = pnand %p190, %p191
      %p193 = pneg %p192
      // Predicated region
      $region9: #{tpu_custom_call.1} parent=5 // pred_check
        _
      $region10: #{tpu_custom_call.1} parent=5 // pred_check_branch
        %195 = sbr.rel (%p192) target = $region12
      $region11: #{tpu_custom_call.1} parent=5 // pred_region
        %s196 = ssub.s32 %s22, 1
        // Predicated region
        $region13: #{tpu_custom_call.1} parent=11 // pred_check
          %p197 = pneg %p88
        $region14: #{tpu_custom_call.1} parent=11 // pred_check_branch
          %199 = sbr.rel (%p197) target = $region16
        $region15: #{tpu_custom_call.1} parent=11 // pred_region
          %s200 = smul.u32 16, %s32
          %202 = vsyncadd [#allocation7], 0
          %s203 = smul.addr %s200, 3
          %s204 = smul.addr %s203, 4
          %s205 = scalar_lea.hbm %s1, %s204
          %s206 = sshll.u32 %s205, 4
          %s207 = int_to_ptr.hbm [resolvable:$true] %s206
          %s208 = sshll.u32 [#allocation6], 4
          %s209 = int_to_ptr.vmem [resolvable:$true] %s208
          %214 = dma.hbm_to_vmem [thread:$0]  %s207, 3072, %s209, [#allocation7], 192, 192, 12
        $region16: #{tpu_custom_call.1} parent=11 // pred_fallthru
          _
        // Predicated region
        $region17: #{tpu_custom_call.1} parent=11 // pred_check
          %p215 = pneg %p109
        $region18: #{tpu_custom_call.1} parent=11 // pred_check_branch
          %217 = sbr.rel (%p215) target = $region20
        $region19: #{tpu_custom_call.1} parent=11 // pred_region
          %219 = vsyncadd [#allocation7], 0
          %s221 = sshll.u32 %s2, 4
          %s222 = int_to_ptr.hbm [resolvable:$true] %s221
          %s223 = sshll.u32 [#allocation8], 4
          %s224 = int_to_ptr.vmem [resolvable:$true] %s223
          %226 = dma.hbm_to_vmem [thread:$0]  %s222, 48, %s224, [#allocation7]
        $region20: #{tpu_custom_call.1} parent=11 // pred_fallthru
          _
        // Predicated region
        $region21: #{tpu_custom_call.1} parent=11 // pred_check
          %p227 = pneg %p130
        $region22: #{tpu_custom_call.1} parent=11 // pred_check_branch
          %229 = sbr.rel (%p227) target = $region24
        $region23: #{tpu_custom_call.1} parent=11 // pred_region
          _
        $region24: #{tpu_custom_call.1} parent=11 // pred_fallthru
          _
      $region12: #{tpu_custom_call.1} parent=5 // pred_fallthru
        _
      %p230 = scmp.lt.s32.totalorder %s22, 2
      // Predicated region
      $region25: #{tpu_custom_call.1} parent=5 // pred_check
        %p231 = pneg %p230
      $region26: #{tpu_custom_call.1} parent=5 // pred_check_branch
        %233 = sbr.rel (%p231) target = $region28
      $region27: #{tpu_custom_call.1} parent=5 // pred_region
        // Predicated region
        $region29: #{tpu_custom_call.1} parent=27 // pred_check
          %p234 = pneg %p56
        $region30: #{tpu_custom_call.1} parent=27 // pred_check_branch
          %236 = sbr.rel (%p234) target = $region32
        $region31: #{tpu_custom_call.1} parent=27 // pred_region
          %s237 = sand.u32 %s46, 1
          %s238 = scalar_lea.sflag [#allocation4], %s237
          %s239 = sand.u32 %s46, 1
          %s240 = smul.addr %s239, 4
          %s241 = scalar_lea.vmem [#allocation3], %s240
          %243 = vsyncadd %s238, 0
          %s244 = sadd.s32 %s30, %s29
          %s245 = smul.addr %s244, 4
          %s246 = scalar_lea.hbm %s0, %s245
          %s248 = sshll.u32 %s246, 4
          %s249 = int_to_ptr.hbm [resolvable:$true] %s248
          %s250 = sshll.u32 %s241, 4
          %s251 = int_to_ptr.vmem [resolvable:$true] %s250
          %253 = dma.hbm_to_vmem [thread:$0]  %s249, 64, %s251, %s238
        $region32: #{tpu_custom_call.1} parent=27 // pred_fallthru
          _
      $region28: #{tpu_custom_call.1} parent=5 // pred_fallthru
        _
      %p254 = scmp.le.s32.totalorder 1, %s22
      %p255 = scmp.lt.s32.totalorder %s22, 3
      %p256 = pnand %p254, %p255
      %p257 = pneg %p256
      // Predicated region
      $region33: #{tpu_custom_call.1} parent=5 // pred_check
        _
      $region34: #{tpu_custom_call.1} parent=5 // pred_check_branch
        %259 = sbr.rel (%p256) target = $region36
      $region35: #{tpu_custom_call.1} parent=5 // pred_region
        %s260 = ssub.s32 %s22, 1
        %s261 = sand.u32 %s49, 1
        %s262 = scalar_lea.sflag [#allocation4], %s261
        %s263 = sand.u32 %s49, 1
        %s264 = smul.addr %s263, 4
        %s265 = scalar_lea.vmem [#allocation3], %s264
        // Predicated region
        $region37: #{tpu_custom_call.1} parent=35 // pred_check
          %p266 = pneg %p62
        $region38: #{tpu_custom_call.1} parent=35 // pred_check_branch
          %268 = sbr.rel (%p266) target = $region40
        $region39: #{tpu_custom_call.1} parent=35 // pred_region
          %270 = dma.done %s262, 64
        $region40: #{tpu_custom_call.1} parent=35 // pred_fallthru
          _
        // Predicated region
        $region41: #{tpu_custom_call.1} parent=35 // pred_check
          %p271 = pneg %p88
        $region42: #{tpu_custom_call.1} parent=35 // pred_check_branch
          %273 = sbr.rel (%p271) target = $region44
        $region43: #{tpu_custom_call.1} parent=35 // pred_region
          %275 = dma.done [#allocation7], 3072
        $region44: #{tpu_custom_call.1} parent=35 // pred_fallthru
          _
        // Predicated region
        $region45: #{tpu_custom_call.1} parent=35 // pred_check
          %p276 = pneg %p109
        $region46: #{tpu_custom_call.1} parent=35 // pred_check_branch
          %278 = sbr.rel (%p276) target = $region48
        $region47: #{tpu_custom_call.1} parent=35 // pred_region
          %280 = dma.done [#allocation7], 48
        $region48: #{tpu_custom_call.1} parent=35 // pred_fallthru
          _
        %s281 = sand.u32 %s49, 1
        %s282 = scalar_lea.sflag [#allocation4], %s281
        %s283 = sand.u32 %s49, 1
        %s284 = smul.addr %s283, 4
        %s285 = scalar_lea.vmem [#allocation3], %s284
        %p286 = pneg %p62
        %p287 = pneg %p59
        %p288 = pneg %p88
        %p289 = pneg %p85
        %p290 = pneg %p109
        %p291 = pneg %p106
        %p292 = pneg %p130
        %p293 = pneg %p127
        %p294 = pneg %p156
        %p295 = pneg %p153
        %s296 = sand.u32 %s143, 1
        %s297 = scalar_lea.sflag [#allocation5], %s296
        %s298 = sand.u32 %s143, 1
        %s299 = smul.addr %s298, 8
        %s300 = scalar_lea.vmem [#allocation9], %s299
        %p301 = pneg %p182
        %p302 = pneg %p179
        %s303 = sand.u32 %s169, 1
        %s304 = scalar_lea.sflag [#allocation11], %s303
        %s305 = sand.u32 %s169, 1
        %s306 = smul.addr %s305, 8
        %s307 = scalar_lea.vmem [#allocation10], %s306
        %s308 = smul.u32 16, %s32
        %p309 = scmp.eq.s32.totalorder %s32, 0
        // Predicated region
        $region49: #{tpu_custom_call.1} parent=35 // pred_check
          %p310 = pneg %p309
        $region50: #{tpu_custom_call.1} parent=35 // pred_check_branch
          %312 = sbr.rel (%p310) target = $region52
        $region51: #{tpu_custom_call.1} parent=35 // pred_region
          %313 = vst [vmem:[#allocation2] sm:$0xff] 0.0
          %314 = vst [vmem:[#allocation2 + $0x8] sm:$0xff] 0.0
          %315 = vst [vmem:[#allocation2 + $0x10] sm:$0xff] 0.0
        $region52: #{tpu_custom_call.1} parent=35 // pred_fallthru
          _
        %v316 = vld [vmem:[#allocation2] sm:$0xff]
        %v317 = vld [vmem:[#allocation2 + $0x8] sm:$0xff]
        %v318 = vld [vmem:[#allocation2 + $0x10] sm:$0xff]
        %v319 = vld [vmem:[%s265] sm:$0xf]
        %v320 = vld [vmem:[#allocation6] sm:$0xff]
        %v321 = vld [vmem:[#allocation6 + $0x8] sm:$0xf]
        %v322 = vld [vmem:[#allocation6 + $0xc] sm:$0xff]
        %v323 = vld [vmem:[#allocation6 + $0x14] sm:$0xf]
        %v324 = vld [vmem:[#allocation6 + $0x18] sm:$0xff]
        %v325 = vld [vmem:[#allocation6 + $0x20] sm:$0xf]
        %v326 = vld [vmem:[#allocation6 + $0x24] sm:$0xff]
        %v327 = vld [vmem:[#allocation6 + $0x2c] sm:$0xf]
        %v328 = vld [vmem:[#allocation6 + $0x30] sm:$0xff]
        %v329 = vld [vmem:[#allocation6 + $0x38] sm:$0xf]
        %v330 = vld [vmem:[#allocation6 + $0x3c] sm:$0xff]
        %v331 = vld [vmem:[#allocation6 + $0x44] sm:$0xf]
        %v332 = vld [vmem:[#allocation6 + $0x48] sm:$0xff]
        %v333 = vld [vmem:[#allocation6 + $0x50] sm:$0xf]
        %v334 = vld [vmem:[#allocation6 + $0x54] sm:$0xff]
        %v335 = vld [vmem:[#allocation6 + $0x5c] sm:$0xf]
        %v336 = vld [vmem:[#allocation6 + $0x60] sm:$0xff]
        %v337 = vld [vmem:[#allocation6 + $0x68] sm:$0xf]
        %v338 = vld [vmem:[#allocation6 + $0x6c] sm:$0xff]
        %v339 = vld [vmem:[#allocation6 + $0x74] sm:$0xf]
        %v340 = vld [vmem:[#allocation6 + $0x78] sm:$0xff]
        %v341 = vld [vmem:[#allocation6 + $0x80] sm:$0xf]
        %v342 = vld [vmem:[#allocation6 + $0x84] sm:$0xff]
        %v343 = vld [vmem:[#allocation6 + $0x8c] sm:$0xf]
        %v344 = vld [vmem:[#allocation6 + $0x90] sm:$0xff]
        %v345 = vld [vmem:[#allocation6 + $0x98] sm:$0xf]
        %v346 = vld [vmem:[#allocation6 + $0x9c] sm:$0xff]
        %v347 = vld [vmem:[#allocation6 + $0xa4] sm:$0xf]
        %v348 = vld [vmem:[#allocation6 + $0xa8] sm:$0xff]
        %v349 = vld [vmem:[#allocation6 + $0xb0] sm:$0xf]
        %v350 = vld [vmem:[#allocation6 + $0xb4] sm:$0xff]
        %v351 = vld [vmem:[#allocation6 + $0xbc] sm:$0xf]
        %v384 = vunpack.c.l.b16 %v320
        %v385 = vunpack.c.h.b16 %v320
        %v386 = vunpack.c.l.b16 %v321
        %v387 = vunpack.c.l.b16 %v322
        %v388 = vunpack.c.h.b16 %v322
        %v389 = vunpack.c.l.b16 %v323
        %v390 = vunpack.c.l.b16 %v324
        %v391 = vunpack.c.h.b16 %v324
        %v392 = vunpack.c.l.b16 %v325
        %v393 = vunpack.c.l.b16 %v326
        %v394 = vunpack.c.h.b16 %v326
        %v395 = vunpack.c.l.b16 %v327
        %v396 = vunpack.c.l.b16 %v328
        %v397 = vunpack.c.h.b16 %v328
        %v398 = vunpack.c.l.b16 %v329
        %v399 = vunpack.c.l.b16 %v330
        %v400 = vunpack.c.h.b16 %v330
        %v401 = vunpack.c.l.b16 %v331
        %v402 = vunpack.c.l.b16 %v332
        %v403 = vunpack.c.h.b16 %v332
        %v404 = vunpack.c.l.b16 %v333
        %v405 = vunpack.c.l.b16 %v334
        %v406 = vunpack.c.h.b16 %v334
        %v407 = vunpack.c.l.b16 %v335
        %v408 = vunpack.c.l.b16 %v336
        %v409 = vunpack.c.h.b16 %v336
        %v410 = vunpack.c.l.b16 %v337
        %v411 = vunpack.c.l.b16 %v338
        %v412 = vunpack.c.h.b16 %v338
        %v413 = vunpack.c.l.b16 %v339
        %v414 = vunpack.c.l.b16 %v340
        %v415 = vunpack.c.h.b16 %v340
        %v416 = vunpack.c.l.b16 %v341
        %v417 = vunpack.c.l.b16 %v342
        %v418 = vunpack.c.h.b16 %v342
        %v419 = vunpack.c.l.b16 %v343
        %v420 = vunpack.c.l.b16 %v344
        %v421 = vunpack.c.h.b16 %v344
        %v422 = vunpack.c.l.b16 %v345
        %v423 = vunpack.c.l.b16 %v346
        %v424 = vunpack.c.h.b16 %v346
        %v425 = vunpack.c.l.b16 %v347
        %v426 = vunpack.c.l.b16 %v348
        %v427 = vunpack.c.h.b16 %v348
        %v428 = vunpack.c.l.b16 %v349
        %v429 = vunpack.c.l.b16 %v350
        %v430 = vunpack.c.h.b16 %v350
        %v431 = vunpack.c.l.b16 %v351
        %v432 = vpack.c.b16 %v387, %v384
        %v433 = vpack.c.b16 %v388, %v385
        %v434 = vpack.c.b16 %v389, %v386
        %v435 = vpack.c.b16 %v393, %v390
        %v436 = vpack.c.b16 %v394, %v391
        %v437 = vpack.c.b16 %v395, %v392
        %v438 = vpack.c.b16 %v399, %v396
        %v439 = vpack.c.b16 %v400, %v397
        %v440 = vpack.c.b16 %v401, %v398
        %v441 = vpack.c.b16 %v405, %v402
        %v442 = vpack.c.b16 %v406, %v403
        %v443 = vpack.c.b16 %v407, %v404
        %v444 = vpack.c.b16 %v411, %v408
        %v445 = vpack.c.b16 %v412, %v409
        %v446 = vpack.c.b16 %v413, %v410
        %v447 = vpack.c.b16 %v417, %v414
        %v448 = vpack.c.b16 %v418, %v415
        %v449 = vpack.c.b16 %v419, %v416
        %v450 = vpack.c.b16 %v423, %v420
        %v451 = vpack.c.b16 %v424, %v421
        %v452 = vpack.c.b16 %v425, %v422
        %v453 = vpack.c.b16 %v429, %v426
        %v454 = vpack.c.b16 %v430, %v427
        %v455 = vpack.c.b16 %v431, %v428
        %480 = vmatpush.bf16.msra.mxu0 %v453
        %481 = vmatpush.bf16.msra.mxu0 %v450
        %482 = vmatpush.bf16.msra.mxu0 %v447
        %483 = vmatpush.bf16.msra.mxu0 %v444
        %484 = vmatpush.bf16.msra.mxu0 %v441
        %485 = vmatpush.bf16.msra.mxu0 %v438
        %486 = vmatpush.bf16.msra.mxu0 %v435
        %487 = vmatpush.bf16.msra.mxu0 %v432
        %488 = vmatmul.bf16.gmra.mxu0 %v319
        %v489 = vpop.f32.mrf.mxu0
        %v490 = vadd.f32 0.0, %v489
        %v491 = vpop.f32.mrf.mxu0
        %492 = vdwg.mxu0
        %493 = vmatpush.bf16.msra.mxu0 %v454
        %494 = vmatpush.bf16.msra.mxu0 %v451
        %495 = vmatpush.bf16.msra.mxu0 %v448
        %496 = vmatpush.bf16.msra.mxu0 %v445
        %497 = vmatpush.bf16.msra.mxu0 %v442
        %498 = vmatpush.bf16.msra.mxu0 %v439
        %499 = vmatpush.bf16.msra.mxu0 %v436
        %500 = vmatpush.bf16.msra.mxu0 %v433
        %501 = vmatmul.bf16.gmra.mxu0 %v319
        %v502 = vpop.f32.mrf.mxu0
        %v503 = vadd.f32 0.0, %v502
        %v504 = vpop.f32.mrf.mxu0
        %505 = vdwg.mxu0
        %506 = vmatpush.bf16.msra.mxu0 %v455
        %507 = vmatpush.bf16.msra.mxu0 %v452
        %508 = vmatpush.bf16.msra.mxu0 %v449
        %509 = vmatpush.bf16.msra.mxu0 %v446
        %510 = vmatpush.bf16.msra.mxu0 %v443
        %511 = vmatpush.bf16.msra.mxu0 %v440
        %512 = vmatpush.bf16.msra.mxu0 %v437
        %513 = vmatpush.bf16.msra.mxu0 %v434
        %514 = vmatmul.bf16.gmra.mxu0 %v319
        %v515 = vpop.f32.mrf.mxu0
        %v516 = vadd.f32 0.0, %v515
        %v517 = vpop.f32.mrf.mxu0
        %518 = vdwg.mxu0
        %v519 = vadd.f32 %v316, %v490
        %v520 = vadd.f32 %v317, %v503
        %v521 = vadd.f32 %v318, %v516
        %522 = vst [vmem:[#allocation2] sm:$0xff] %v519
        %523 = vst [vmem:[#allocation2 + $0x8] sm:$0xff] %v520
        %524 = vst [vmem:[#allocation2 + $0x10] sm:$0xff] %v521
        // Predicated region
        $region53: #{tpu_custom_call.1} parent=35 // pred_check
          %p525 = pneg %p309
        $region54: #{tpu_custom_call.1} parent=35 // pred_check_branch
          %527 = sbr.rel (%p525) target = $region56
        $region55: #{tpu_custom_call.1} parent=35 // pred_region
          %v528 = vld [vmem:[#allocation2] sm:$0xff]
          %v529 = vld [vmem:[#allocation2 + $0x8] sm:$0xff]
          %v530 = vld [vmem:[#allocation2 + $0x10] sm:$0xff]
          %v531 = vld [vmem:[#allocation8] sm:$0x7]
          %v533 = vperm.slane %v531, 0
          %v534 = vperm.slane %v531, 1
          %v535 = vperm.slane %v531, 2
          %v539 = vadd.f32 %v528, %v533
          %v540 = vadd.f32 %v529, %v534
          %v541 = vadd.f32 %v530, %v535
          %v542 = vmul.f32 %v540, 1.442695
          %v543 = vpow.pop %v542
          %v544 = vld [vmem:[%s3] sm:$0x1]
          %v546 = vperm.slane %v544, 0
          %v548 = vmul.f32 %v543, %v546
          %v549 = vadd.f32 %v548, %v539
          %550 = vst [vmem:[%s300] sm:$0xff] %v549
          %551 = vst [vmem:[%s307] sm:$0xff] %v541
        $region56: #{tpu_custom_call.1} parent=35 // pred_fallthru
          _
        %s552 = sand.u32 %s143, 1
        %s553 = scalar_lea.sflag [#allocation5], %s552
        %s554 = sand.u32 %s143, 1
        %s555 = smul.addr %s554, 8
        %s556 = scalar_lea.vmem [#allocation9], %s555
        %s557 = sand.u32 %s169, 1
        %s558 = scalar_lea.sflag [#allocation11], %s557
        %s559 = sand.u32 %s169, 1
        %s560 = smul.addr %s559, 8
        %s561 = scalar_lea.vmem [#allocation10], %s560
        // Predicated region
        $region57: #{tpu_custom_call.1} parent=35 // pred_check
          %p562 = pneg %p153
        $region58: #{tpu_custom_call.1} parent=35 // pred_check_branch
          %564 = sbr.rel (%p562) target = $region60
        $region59: #{tpu_custom_call.1} parent=35 // pred_region
          %566 = vsyncadd %s553, 0
          %s567 = smul.addr %s31, 8
          %s568 = scalar_lea.hbm %s4, %s567
          %s570 = sshll.u32 %s556, 4
          %s571 = int_to_ptr.vmem [resolvable:$true] %s570
          %s572 = sshll.u32 %s568, 4
          %s573 = int_to_ptr.hbm [resolvable:$true] %s572
          %575 = dma.vmem_to_hbm [thread:$0]  %s571, 128, %s573, %s553
        $region60: #{tpu_custom_call.1} parent=35 // pred_fallthru
          _
        // Predicated region
        $region61: #{tpu_custom_call.1} parent=35 // pred_check
          %p576 = pneg %p179
        $region62: #{tpu_custom_call.1} parent=35 // pred_check_branch
          %578 = sbr.rel (%p576) target = $region64
        $region63: #{tpu_custom_call.1} parent=35 // pred_region
          %580 = vsyncadd %s558, 0
          %s581 = smul.addr %s31, 8
          %s582 = scalar_lea.hbm %s5, %s581
          %s584 = sshll.u32 %s561, 4
          %s585 = int_to_ptr.vmem [resolvable:$true] %s584
          %s586 = sshll.u32 %s582, 4
          %s587 = int_to_ptr.hbm [resolvable:$true] %s586
          %589 = dma.vmem_to_hbm [thread:$0]  %s585, 128, %s587, %s558
        $region64: #{tpu_custom_call.1} parent=35 // pred_fallthru
          _
      $region36: #{tpu_custom_call.1} parent=5 // pred_fallthru
        _
      %p590 = scmp.le.s32.totalorder 2, %s22
      // Predicated region
      $region65: #{tpu_custom_call.1} parent=5 // pred_check
        %p591 = pneg %p590
      $region66: #{tpu_custom_call.1} parent=5 // pred_check_branch
        %593 = sbr.rel (%p591) target = $region68
      $region67: #{tpu_custom_call.1} parent=5 // pred_region
        %s594 = ssub.s32 %s22, 2
        // Predicated region
        $region69: #{tpu_custom_call.1} parent=67 // pred_check
          %p595 = pneg %p159
        $region70: #{tpu_custom_call.1} parent=67 // pred_check_branch
          %597 = sbr.rel (%p595) target = $region72
        $region71: #{tpu_custom_call.1} parent=67 // pred_region
          %s598 = sand.u32 %s144, 1
          %s599 = scalar_lea.sflag [#allocation5], %s598
          %s600 = sand.u32 %s144, 1
          %s601 = smul.addr %s600, 8
          %s602 = scalar_lea.vmem [#allocation9], %s601
          %604 = dma.done %s599, 128
        $region72: #{tpu_custom_call.1} parent=67 // pred_fallthru
          _
        // Predicated region
        $region73: #{tpu_custom_call.1} parent=67 // pred_check
          %p605 = pneg %p185
        $region74: #{tpu_custom_call.1} parent=67 // pred_check_branch
          %607 = sbr.rel (%p605) target = $region76
        $region75: #{tpu_custom_call.1} parent=67 // pred_region
          %s608 = sand.u32 %s170, 1
          %s609 = scalar_lea.sflag [#allocation11], %s608
          %s610 = sand.u32 %s170, 1
          %s611 = smul.addr %s610, 8
          %s612 = scalar_lea.vmem [#allocation10], %s611
          %614 = dma.done %s609, 128
        $region76: #{tpu_custom_call.1} parent=67 // pred_fallthru
          _
      $region68: #{tpu_custom_call.1} parent=5 // pred_fallthru
        _
    $region6: #{tpu_custom_call.1} parent=1 // loop_footer
      %s26 = sadd.s32 1, %s22
    $region7: #{tpu_custom_call.1} parent=1 // loop_footer_branch
      %21 = sbr.rel target = $region3
    $region8: #{tpu_custom_call.1} parent=1 // loop_exit
      _
    %615 = vsyncpa [#allocation4], 1
    %s616 = scalar_lea.sflag [#allocation4], 1
    %617 = vsyncpa %s616, 1
    %618 = vsyncpa [#allocation7], 1
    %619 = vsyncpa [#allocation5], 1
    %s620 = scalar_lea.sflag [#allocation5], 1
    %621 = vsyncpa %s620, 1
    %622 = vsyncpa [#allocation11], 1
    %s623 = scalar_lea.sflag [#allocation11], 1
    %624 = vsyncpa %s623, 1

// kernel: tpu_custom_call.1
$region0: #{tpu_custom_call.1}
  #allocation0 [shape = 'u32[]', space=smem, size = 0x4, offset = 0x4, fixed_abs, tag = 'smem constant byte address 0x4 - core index']
  #allocation1 [shape = 'u32[72,128]{1,0:T(1,128)}', space=vmem, size = 0x9000, scoped, tag = 'internal scratch']
  #allocation2 [shape = 'f32[8,384]{1,0:T(8,128)}', space=vmem, size = 0x3000, scoped, tag = 'scratch operand']
  %s0 = inlined_call_operand.hbm [shape: bf16[16,128], index: 0, kind: input, shape index: {}]
  %s1 = inlined_call_operand.hbm [shape: bf16[128,384], index: 1, kind: input, shape index: {}]
  %s2 = inlined_call_operand.hbm [shape: f32[1,384], index: 2, kind: input, shape index: {}]
  %s3 = inlined_call_operand.vmem [shape: f32[1,128], index: 3, kind: input, shape index: {}]
  %s4 = inlined_call_operand.hbm [shape: f32[16,128], index: 4, kind: output, shape index: {0}]
  %s5 = inlined_call_operand.hbm [shape: f32[16,128], index: 5, kind: output, shape index: {1}]
  %6 = xla_tuple %s4, %s5
  %s7 = sld [smem:[#allocation0]]
  $region77: #{tpu_custom_call.1} parent=0
    _
  %s9 = ssub.s32 1, %s7
  %s10 = scalar_select 0, %s9, %s7
  $region1: #{tpu_custom_call.1} parent=0
    #allocation3 [shape = 'u8[4096]{0}', space=vmem, size = 0x1000, scoped, tag = 'input window, operand 0']
    #allocation4 [shape = 's32[2]{0}', space=sflag, size = 0x8, scoped, tag = 'scoped memory for tpu_custom_call.1']
    #allocation5 [shape = 's32[2]{0}', space=sflag, size = 0x8, scoped, tag = 'scoped memory for tpu_custom_call.1']
    #allocation6 [shape = 'u8[98304]{0}', space=vmem, size = 0x18000, scoped, tag = 'input window, operand 1, single buffered']
    #allocation7 [shape = 's32[1]{0}', space=sflag, size = 0x4, scoped, tag = 'scoped memory for tpu_custom_call.1']
    #allocation8 [shape = 'u8[1536]{0}', space=vmem, size = 0x800, scoped, tag = 'input window, operand 2, single buffered']
    #allocation9 [shape = 'u8[8192]{0}', space=vmem, size = 0x2000, scoped, tag = 'output window, operand 0']
    #allocation10 [shape = 'u8[8192]{0}', space=vmem, size = 0x2000, scoped, tag = 'output window, operand 1']
    #allocation11 [shape = 's32[2]{0}', space=sflag, size = 0x8, scoped, tag = 'scoped memory for tpu_custom_call.1']
    %11 = vsyncpa [#allocation4], 0
    %s12 = scalar_lea.sflag [#allocation4], 1
    %13 = vsyncpa %s12, 0
    %14 = vsyncpa [#allocation7], 0
    %15 = vsyncpa [#allocation5], 0
    %s16 = scalar_lea.sflag [#allocation5], 1
    %17 = vsyncpa %s16, 0
    %18 = vsyncpa [#allocation11], 0
    %s19 = scalar_lea.sflag [#allocation11], 1
    %20 = vsyncpa %s19, 0
    loop: start=0, step=1, limit=4
    $region2: #{tpu_custom_call.1} parent=1 // loop_pre_header
      _
    $region3: #{tpu_custom_call.1} parent=1 // loop_header
      %s22 = sphi 0, %s26
      %p23 = scmp.ge.s32.totalorder %s22, 4
      %s29 = sphi 0, %s41
      %s30 = sphi 0, %s37
      %s31 = sphi 0, %s29
      %s32 = sphi 0, %s30
      %s33 = sphi 0, %s31
      %s34 = sphi 0, %s32
      %s46 = sphi 0, %s48
      %s49 = sphi 0, %s46
      %s50 = sphi 0, %s49
      %s66 = sphi 0, %s50
      %s72 = sphi 0, %s74
      %s75 = sphi 0, %s72
      %s76 = sphi 0, %s75
      %s92 = sphi 0, %s76
      %s96 = sphi 0, %s96
      %s98 = sphi 0, %s96
      %s99 = sphi 0, %s98
      %s113 = sphi 0, %s99
      %s117 = sphi 0, %s117
      %s119 = sphi 0, %s117
      %s120 = sphi 0, %s119
      %s134 = sphi 0, %s120
      %s140 = sphi 0, %s142
      %s143 = sphi 0, %s140
      %s144 = sphi 0, %s143
      %s160 = sphi 0, %s144
      %s166 = sphi 0, %s168
      %s169 = sphi 0, %s166
      %s170 = sphi 0, %s169
      %s186 = sphi 0, %s170
    $region4: #{tpu_custom_call.1} parent=1 // loop_header_branch
      %25 = sbr.rel (%p23) target = $region8
    $region5: #{tpu_custom_call.1} parent=1 // loop_body
      %s27 = ssub.s32 %s22, 1
      %s28 = ssub.s32 %s22, 2
      %s35 = sadd.s32 1, %s30
      %p36 = scmp.ge.s32.totalorder %s35, 1
      %s37 = scalar_select %p36, 0, %s35
      %s38 = sadd.s32 1, %s29
      %s39 = scalar_select %p36, %s38, %s29
      %p40 = scmp.ge.s32.totalorder %s39, 2
      %s41 = scalar_select %p40, 0, %s39
      %s42 = ssub.s32 %s29, %s41
      %s43 = ssub.s32 %s30, %s37
      %s44 = sor.u32 %s42, %s43
      %p45 = scmp.eq.s32.totalorder %s44, 0
      %s47 = sadd.s32 %s46, 1
      %s48 = scalar_select %p45, %s46, %s47
      %p51 = pneg %p45
      %p52 = scmp.eq.s32.totalorder %s22, 1
      %p53 = por %p51, %p52
      %p54 = scmp.ne.s32.totalorder %s46, %s49
      %p55 = scmp.eq.s32.totalorder %s22, 0
      %p56 = por %p54, %p55
      %p57 = scmp.ne.s32.totalorder %s46, %s49
      %p58 = scmp.eq.s32.totalorder %s27, 1
      %p59 = por %p57, %p58
      %p60 = scmp.ne.s32.totalorder %s49, %s50
      %p61 = scmp.eq.s32.totalorder %s27, 0
      %p62 = por %p60, %p61
      %p63 = scmp.ne.s32.totalorder %s49, %s50
      %p64 = scmp.eq.s32.totalorder %s28, 1
      %p65 = por %p63, %p64
      %p67 = scmp.ne.s32.totalorder %s50, %s66
      %p68 = scmp.eq.s32.totalorder %s28, 0
      %p69 = por %p67, %p68
      %s70 = ssub.s32 %s30, %s37
      %p71 = scmp.eq.s32.totalorder %s70, 0
      %s73 = sadd.s32 %s72, 1
      %s74 = scalar_select %p71, %s72, %s73
      %p77 = pneg %p71
      %p78 = scmp.eq.s32.totalorder %s22, 1
      %p79 = por %p77, %p78
      %p80 = scmp.ne.s32.totalorder %s72, %s75
      %p81 = scmp.eq.s32.totalorder %s22, 0
      %p82 = por %p80, %p81
      %p83 = scmp.ne.s32.totalorder %s72, %s75
      %p84 = scmp.eq.s32.totalorder %s27, 1
      %p85 = por %p83, %p84
      %p86 = scmp.ne.s32.totalorder %s75, %s76
      %p87 = scmp.eq.s32.totalorder %s27, 0
      %p88 = por %p86, %p87
      %p89 = scmp.ne.s32.totalorder %s75, %s76
      %p90 = scmp.eq.s32.totalorder %s28, 1
      %p91 = por %p89, %p90
      %p93 = scmp.ne.s32.totalorder %s76, %s92
      %p94 = scmp.eq.s32.totalorder %s28, 0
      %p95 = por %p93, %p94
      %s97 = sadd.s32 %s96, 1
      %p100 = scmp.eq.s32.totalorder %s22, 1
      %p101 = scmp.ne.s32.totalorder %s96, %s98
      %p102 = scmp.eq.s32.totalorder %s22, 0
      %p103 = por %p101, %p102
      %p104 = scmp.ne.s32.totalorder %s96, %s98
      %p105 = scmp.eq.s32.totalorder %s27, 1
      %p106 = por %p104, %p105
      %p107 = scmp.ne.s32.totalorder %s98, %s99
      %p108 = scmp.eq.s32.totalorder %s27, 0
      %p109 = por %p107, %p108
      %p110 = scmp.ne.s32.totalorder %s98, %s99
      %p111 = scmp.eq.s32.totalorder %s28, 1
      %p112 = por %p110, %p111
      %p114 = scmp.ne.s32.totalorder %s99, %s113
      %p115 = scmp.eq.s32.totalorder %s28, 0
      %p116 = por %p114, %p115
      %s118 = sadd.s32 %s117, 1
      %p121 = scmp.eq.s32.totalorder %s22, 1
      %p122 = scmp.ne.s32.totalorder %s117, %s119
      %p123 = scmp.eq.s32.totalorder %s22, 0
      %p124 = por %p122, %p123
      %p125 = scmp.ne.s32.totalorder %s117, %s119
      %p126 = scmp.eq.s32.totalorder %s27, 1
      %p127 = por %p125, %p126
      %p128 = scmp.ne.s32.totalorder %s119, %s120
      %p129 = scmp.eq.s32.totalorder %s27, 0
      %p130 = por %p128, %p129
      %p131 = scmp.ne.s32.totalorder %s119, %s120
      %p132 = scmp.eq.s32.totalorder %s28, 1
      %p133 = por %p131, %p132
      %p135 = scmp.ne.s32.totalorder %s120, %s134
      %p136 = scmp.eq.s32.totalorder %s28, 0
      %p137 = por %p135, %p136
      %s138 = ssub.s32 %s29, %s41
      %p139 = scmp.eq.s32.totalorder %s138, 0
      %s141 = sadd.s32 %s140, 1
      %s142 = scalar_select %p139, %s140, %s141
      %p145 = pneg %p139
      %p146 = scmp.eq.s32.totalorder %s22, 1
      %p147 = por %p145, %p146
      %p148 = scmp.ne.s32.totalorder %s140, %s143
      %p149 = scmp.eq.s32.totalorder %s22, 0
      %p150 = por %p148, %p149
      %p151 = scmp.ne.s32.totalorder %s140, %s143
      %p152 = scmp.eq.s32.totalorder %s27, 1
      %p153 = por %p151, %p152
      %p154 = scmp.ne.s32.totalorder %s143, %s144
      %p155 = scmp.eq.s32.totalorder %s27, 0
      %p156 = por %p154, %p155
      %p157 = scmp.ne.s32.totalorder %s143, %s144
      %p158 = scmp.eq.s32.totalorder %s28, 1
      %p159 = por %p157, %p158
      %p161 = scmp.ne.s32.totalorder %s144, %s160
      %p162 = scmp.eq.s32.totalorder %s28, 0
      %p163 = por %p161, %p162
      %s164 = ssub.s32 %s29, %s41
      %p165 = scmp.eq.s32.totalorder %s164, 0
      %s167 = sadd.s32 %s166, 1
      %s168 = scalar_select %p165, %s166, %s167
      %p171 = pneg %p165
      %p172 = scmp.eq.s32.totalorder %s22, 1
      %p173 = por %p171, %p172
      %p174 = scmp.ne.s32.totalorder %s166, %s169
      %p175 = scmp.eq.s32.totalorder %s22, 0
      %p176 = por %p174, %p175
      %p177 = scmp.ne.s32.totalorder %s166, %s169
      %p178 = scmp.eq.s32.totalorder %s27, 1
      %p179 = por %p177, %p178
      %p180 = scmp.ne.s32.totalorder %s169, %s170
      %p181 = scmp.eq.s32.totalorder %s27, 0
      %p182 = por %p180, %p181
      %p183 = scmp.ne.s32.totalorder %s169, %s170
      %p184 = scmp.eq.s32.totalorder %s28, 1
      %p185 = por %p183, %p184
      %p187 = scmp.ne.s32.totalorder %s170, %s186
      %p188 = scmp.eq.s32.totalorder %s28, 0
      %p189 = por %p187, %p188
      %p190 = scmp.le.s32.totalorder 1, %s22
      %p191 = scmp.lt.s32.totalorder %s22, 3
      %p192 = pnand %p190, %p191
      %p193 = pneg %p192
      // Predicated region
      $region9: #{tpu_custom_call.1} parent=5 // pred_check
        _
      $region10: #{tpu_custom_call.1} parent=5 // pred_check_branch
        %195 = sbr.rel (%p192) target = $region12
      $region11: #{tpu_custom_call.1} parent=5 // pred_region
        %s196 = ssub.s32 %s22, 1
        // Predicated region
        $region13: #{tpu_custom_call.1} parent=11 // pred_check
          %p197 = pneg %p88
        $region14: #{tpu_custom_call.1} parent=11 // pred_check_branch
          %199 = sbr.rel (%p197) target = $region16
        $region15: #{tpu_custom_call.1} parent=11 // pred_region
          %s200 = smul.u32 16, %s32
          %202 = vsyncadd [#allocation7], 0
          %s203 = smul.addr %s200, 3
          %s204 = smul.addr %s203, 4
          %s205 = scalar_lea.hbm %s1, %s204
          %s206 = sshll.u32 %s205, 4
          %s207 = int_to_ptr.hbm [resolvable:$true] %s206
          %s208 = sshll.u32 [#allocation6], 4
          %s209 = int_to_ptr.vmem [resolvable:$true] %s208
          %214 = dma.hbm_to_vmem [thread:$0]  %s207, 3072, %s209, [#allocation7], 192, 192, 12
        $region16: #{tpu_custom_call.1} parent=11 // pred_fallthru
          _
        // Predicated region
        $region17: #{tpu_custom_call.1} parent=11 // pred_check
          %p215 = pneg %p109
        $region18: #{tpu_custom_call.1} parent=11 // pred_check_branch
          %217 = sbr.rel (%p215) target = $region20
        $region19: #{tpu_custom_call.1} parent=11 // pred_region
          %219 = vsyncadd [#allocation7], 0
          %s221 = sshll.u32 %s2, 4
          %s222 = int_to_ptr.hbm [resolvable:$true] %s221
          %s223 = sshll.u32 [#allocation8], 4
          %s224 = int_to_ptr.vmem [resolvable:$true] %s223
          %226 = dma.hbm_to_vmem [thread:$0]  %s222, 48, %s224, [#allocation7]
        $region20: #{tpu_custom_call.1} parent=11 // pred_fallthru
          _
        // Predicated region
        $region21: #{tpu_custom_call.1} parent=11 // pred_check
          %p227 = pneg %p130
        $region22: #{tpu_custom_call.1} parent=11 // pred_check_branch
          %229 = sbr.rel (%p227) target = $region24
        $region23: #{tpu_custom_call.1} parent=11 // pred_region
          _
        $region24: #{tpu_custom_call.1} parent=11 // pred_fallthru
          _
      $region12: #{tpu_custom_call.1} parent=5 // pred_fallthru
        _
      %p230 = scmp.lt.s32.totalorder %s22, 2
      // Predicated region
      $region25: #{tpu_custom_call.1} parent=5 // pred_check
        %p231 = pneg %p230
      $region26: #{tpu_custom_call.1} parent=5 // pred_check_branch
        %233 = sbr.rel (%p231) target = $region28
      $region27: #{tpu_custom_call.1} parent=5 // pred_region
        // Predicated region
        $region29: #{tpu_custom_call.1} parent=27 // pred_check
          %p234 = pneg %p56
        $region30: #{tpu_custom_call.1} parent=27 // pred_check_branch
          %236 = sbr.rel (%p234) target = $region32
        $region31: #{tpu_custom_call.1} parent=27 // pred_region
          %s237 = sand.u32 %s46, 1
          %s238 = scalar_lea.sflag [#allocation4], %s237
          %s239 = sand.u32 %s46, 1
          %s240 = smul.addr %s239, 4
          %s241 = scalar_lea.vmem [#allocation3], %s240
          %243 = vsyncadd %s238, 0
          %s244 = sadd.s32 %s30, %s29
          %s245 = smul.addr %s244, 4
          %s246 = scalar_lea.hbm %s0, %s245
          %s248 = sshll.u32 %s246, 4
          %s249 = int_to_ptr.hbm [resolvable:$true] %s248
          %s250 = sshll.u32 %s241, 4
          %s251 = int_to_ptr.vmem [resolvable:$true] %s250
          %253 = dma.hbm_to_vmem [thread:$0]  %s249, 64, %s251, %s238
        $region32: #{tpu_custom_call.1} parent=27 // pred_fallthru
          _
      $region28: #{tpu_custom_call.1} parent=5 // pred_fallthru
        _
      %p254 = scmp.le.s32.totalorder 1, %s22
      %p255 = scmp.lt.s32.totalorder %s22, 3
      %p256 = pnand %p254, %p255
      %p257 = pneg %p256
      // Predicated region
      $region33: #{tpu_custom_call.1} parent=5 // pred_check
        _
      $region34: #{tpu_custom_call.1} parent=5 // pred_check_branch
        %259 = sbr.rel (%p256) target = $region36
      $region35: #{tpu_custom_call.1} parent=5 // pred_region
        %s260 = ssub.s32 %s22, 1
        %s261 = sand.u32 %s49, 1
        %s262 = scalar_lea.sflag [#allocation4], %s261
        %s263 = sand.u32 %s49, 1
        %s264 = smul.addr %s263, 4
        %s265 = scalar_lea.vmem [#allocation3], %s264
        // Predicated region
        $region37: #{tpu_custom_call.1} parent=35 // pred_check
          %p266 = pneg %p62
        $region38: #{tpu_custom_call.1} parent=35 // pred_check_branch
          %268 = sbr.rel (%p266) target = $region40
        $region39: #{tpu_custom_call.1} parent=35 // pred_region
          %270 = dma.done %s262, 64
        $region40: #{tpu_custom_call.1} parent=35 // pred_fallthru
          _
        // Predicated region
        $region41: #{tpu_custom_call.1} parent=35 // pred_check
          %p271 = pneg %p88
        $region42: #{tpu_custom_call.1} parent=35 // pred_check_branch
          %273 = sbr.rel (%p271) target = $region44
        $region43: #{tpu_custom_call.1} parent=35 // pred_region
          %275 = dma.done [#allocation7], 3072
        $region44: #{tpu_custom_call.1} parent=35 // pred_fallthru
          _
        // Predicated region
        $region45: #{tpu_custom_call.1} parent=35 // pred_check
          %p276 = pneg %p109
        $region46: #{tpu_custom_call.1} parent=35 // pred_check_branch
          %278 = sbr.rel (%p276) target = $region48
        $region47: #{tpu_custom_call.1} parent=35 // pred_region
          %280 = dma.done [#allocation7], 48
        $region48: #{tpu_custom_call.1} parent=35 // pred_fallthru
          _
        %s281 = sand.u32 %s49, 1
        %s282 = scalar_lea.sflag [#allocation4], %s281
        %s283 = sand.u32 %s49, 1
        %s284 = smul.addr %s283, 4
        %s285 = scalar_lea.vmem [#allocation3], %s284
        %p286 = pneg %p62
        %p287 = pneg %p59
        %p288 = pneg %p88
        %p289 = pneg %p85
        %p290 = pneg %p109
        %p291 = pneg %p106
        %p292 = pneg %p130
        %p293 = pneg %p127
        %p294 = pneg %p156
        %p295 = pneg %p153
        %s296 = sand.u32 %s143, 1
        %s297 = scalar_lea.sflag [#allocation5], %s296
        %s298 = sand.u32 %s143, 1
        %s299 = smul.addr %s298, 8
        %s300 = scalar_lea.vmem [#allocation9], %s299
        %p301 = pneg %p182
        %p302 = pneg %p179
        %s303 = sand.u32 %s169, 1
        %s304 = scalar_lea.sflag [#allocation11], %s303
        %s305 = sand.u32 %s169, 1
        %s306 = smul.addr %s305, 8
        %s307 = scalar_lea.vmem [#allocation10], %s306
        %s308 = smul.u32 16, %s32
        %p309 = scmp.eq.s32.totalorder %s32, 0
        // Predicated region
        $region49: #{tpu_custom_call.1} parent=35 // pred_check
          %p310 = pneg %p309
        $region50: #{tpu_custom_call.1} parent=35 // pred_check_branch
          %312 = sbr.rel (%p310) target = $region52
        $region51: #{tpu_custom_call.1} parent=35 // pred_region
          %313 = vst [vmem:[#allocation2] sm:$0xff] 0.0
          %314 = vst [vmem:[#allocation2 + $0x8] sm:$0xff] 0.0
          %315 = vst [vmem:[#allocation2 + $0x10] sm:$0xff] 0.0
        $region52: #{tpu_custom_call.1} parent=35 // pred_fallthru
          _
        %v316 = vld [vmem:[#allocation2] sm:$0xff]
        %v317 = vld [vmem:[#allocation2 + $0x8] sm:$0xff]
        %v318 = vld [vmem:[#allocation2 + $0x10] sm:$0xff]
        %v319 = vld [vmem:[%s265] sm:$0xf]
        %v320 = vld [vmem:[#allocation6] sm:$0xff]
        %v321 = vld [vmem:[#allocation6 + $0x8] sm:$0xf]
        %v322 = vld [vmem:[#allocation6 + $0xc] sm:$0xff]
        %v323 = vld [vmem:[#allocation6 + $0x14] sm:$0xf]
        %v324 = vld [vmem:[#allocation6 + $0x18] sm:$0xff]
        %v325 = vld [vmem:[#allocation6 + $0x20] sm:$0xf]
        %v326 = vld [vmem:[#allocation6 + $0x24] sm:$0xff]
        %v327 = vld [vmem:[#allocation6 + $0x2c] sm:$0xf]
        %v328 = vld [vmem:[#allocation6 + $0x30] sm:$0xff]
        %v329 = vld [vmem:[#allocation6 + $0x38] sm:$0xf]
        %v330 = vld [vmem:[#allocation6 + $0x3c] sm:$0xff]
        %v331 = vld [vmem:[#allocation6 + $0x44] sm:$0xf]
        %v332 = vld [vmem:[#allocation6 + $0x48] sm:$0xff]
        %v333 = vld [vmem:[#allocation6 + $0x50] sm:$0xf]
        %v334 = vld [vmem:[#allocation6 + $0x54] sm:$0xff]
        %v335 = vld [vmem:[#allocation6 + $0x5c] sm:$0xf]
        %v336 = vld [vmem:[#allocation6 + $0x60] sm:$0xff]
        %v337 = vld [vmem:[#allocation6 + $0x68] sm:$0xf]
        %v338 = vld [vmem:[#allocation6 + $0x6c] sm:$0xff]
        %v339 = vld [vmem:[#allocation6 + $0x74] sm:$0xf]
        %v340 = vld [vmem:[#allocation6 + $0x78] sm:$0xff]
        %v341 = vld [vmem:[#allocation6 + $0x80] sm:$0xf]
        %v342 = vld [vmem:[#allocation6 + $0x84] sm:$0xff]
        %v343 = vld [vmem:[#allocation6 + $0x8c] sm:$0xf]
        %v344 = vld [vmem:[#allocation6 + $0x90] sm:$0xff]
        %v345 = vld [vmem:[#allocation6 + $0x98] sm:$0xf]
        %v346 = vld [vmem:[#allocation6 + $0x9c] sm:$0xff]
        %v347 = vld [vmem:[#allocation6 + $0xa4] sm:$0xf]
        %v348 = vld [vmem:[#allocation6 + $0xa8] sm:$0xff]
        %v349 = vld [vmem:[#allocation6 + $0xb0] sm:$0xf]
        %v350 = vld [vmem:[#allocation6 + $0xb4] sm:$0xff]
        %v351 = vld [vmem:[#allocation6 + $0xbc] sm:$0xf]
        %v384 = vunpack.c.l.b16 %v320
        %v385 = vunpack.c.h.b16 %v320
        %v386 = vunpack.c.l.b16 %v321
        %v387 = vunpack.c.l.b16 %v322
        %v388 = vunpack.c.h.b16 %v322
        %v389 = vunpack.c.l.b16 %v323
        %v390 = vunpack.c.l.b16 %v324
        %v391 = vunpack.c.h.b16 %v324
        %v392 = vunpack.c.l.b16 %v325
        %v393 = vunpack.c.l.b16 %v326
        %v394 = vunpack.c.h.b16 %v326
        %v395 = vunpack.c.l.b16 %v327
        %v396 = vunpack.c.l.b16 %v328
        %v397 = vunpack.c.h.b16 %v328
        %v398 = vunpack.c.l.b16 %v329
        %v399 = vunpack.c.l.b16 %v330
        %v400 = vunpack.c.h.b16 %v330
        %v401 = vunpack.c.l.b16 %v331
        %v402 = vunpack.c.l.b16 %v332
        %v403 = vunpack.c.h.b16 %v332
        %v404 = vunpack.c.l.b16 %v333
        %v405 = vunpack.c.l.b16 %v334
        %v406 = vunpack.c.h.b16 %v334
        %v407 = vunpack.c.l.b16 %v335
        %v408 = vunpack.c.l.b16 %v336
        %v409 = vunpack.c.h.b16 %v336
        %v410 = vunpack.c.l.b16 %v337
        %v411 = vunpack.c.l.b16 %v338
        %v412 = vunpack.c.h.b16 %v338
        %v413 = vunpack.c.l.b16 %v339
        %v414 = vunpack.c.l.b16 %v340
        %v415 = vunpack.c.h.b16 %v340
        %v416 = vunpack.c.l.b16 %v341
        %v417 = vunpack.c.l.b16 %v342
        %v418 = vunpack.c.h.b16 %v342
        %v419 = vunpack.c.l.b16 %v343
        %v420 = vunpack.c.l.b16 %v344
        %v421 = vunpack.c.h.b16 %v344
        %v422 = vunpack.c.l.b16 %v345
        %v423 = vunpack.c.l.b16 %v346
        %v424 = vunpack.c.h.b16 %v346
        %v425 = vunpack.c.l.b16 %v347
        %v426 = vunpack.c.l.b16 %v348
        %v427 = vunpack.c.h.b16 %v348
        %v428 = vunpack.c.l.b16 %v349
        %v429 = vunpack.c.l.b16 %v350
        %v430 = vunpack.c.h.b16 %v350
        %v431 = vunpack.c.l.b16 %v351
        %v432 = vpack.c.b16 %v387, %v384
        %v433 = vpack.c.b16 %v388, %v385
        %v434 = vpack.c.b16 %v389, %v386
        %v435 = vpack.c.b16 %v393, %v390
        %v436 = vpack.c.b16 %v394, %v391
        %v437 = vpack.c.b16 %v395, %v392
        %v438 = vpack.c.b16 %v399, %v396
        %v439 = vpack.c.b16 %v400, %v397
        %v440 = vpack.c.b16 %v401, %v398
        %v441 = vpack.c.b16 %v405, %v402
        %v442 = vpack.c.b16 %v406, %v403
        %v443 = vpack.c.b16 %v407, %v404
        %v444 = vpack.c.b16 %v411, %v408
        %v445 = vpack.c.b16 %v412, %v409
        %v446 = vpack.c.b16 %v413, %v410
        %v447 = vpack.c.b16 %v417, %v414
        %v448 = vpack.c.b16 %v418, %v415
        %v449 = vpack.c.b16 %v419, %v416
        %v450 = vpack.c.b16 %v423, %v420
        %v451 = vpack.c.b16 %v424, %v421
        %v452 = vpack.c.b16 %v425, %v422
        %v453 = vpack.c.b16 %v429, %v426
        %v454 = vpack.c.b16 %v430, %v427
        %v455 = vpack.c.b16 %v431, %v428
        %480 = vmatpush.bf16.msra.mxu0 %v453
        %481 = vmatpush.bf16.msra.mxu0 %v450
        %482 = vmatpush.bf16.msra.mxu0 %v447
        %483 = vmatpush.bf16.msra.mxu0 %v444
        %484 = vmatpush.bf16.msra.mxu0 %v441
        %485 = vmatpush.bf16.msra.mxu0 %v438
        %486 = vmatpush.bf16.msra.mxu0 %v435
        %487 = vmatpush.bf16.msra.mxu0 %v432
        %488 = vmatmul.bf16.gmra.mxu0 %v319
        %v489 = vpop.f32.mrf.mxu0
        %v490 = vadd.f32 0.0, %v489
        %v491 = vpop.f32.mrf.mxu0
        %492 = vdwg.mxu0
        %493 = vmatpush.bf16.msra.mxu0 %v454
        %494 = vmatpush.bf16.msra.mxu0 %v451
        %495 = vmatpush.bf16.msra.mxu0 %v448
        %496 = vmatpush.bf16.msra.mxu0 %v445
        %497 = vmatpush.bf16.msra.mxu0 %v442
        %498 = vmatpush.bf16.msra.mxu0 %v439
        %499 = vmatpush.bf16.msra.mxu0 %v436
        %500 = vmatpush.bf16.msra.mxu0 %v433
        %501 = vmatmul.bf16.gmra.mxu0 %v319
        %v502 = vpop.f32.mrf.mxu0
        %v503 = vadd.f32 0.0, %v502
        %v504 = vpop.f32.mrf.mxu0
        %505 = vdwg.mxu0
        %506 = vmatpush.bf16.msra.mxu0 %v455
        %507 = vmatpush.bf16.msra.mxu0 %v452
        %508 = vmatpush.bf16.msra.mxu0 %v449
        %509 = vmatpush.bf16.msra.mxu0 %v446
        %510 = vmatpush.bf16.msra.mxu0 %v443
        %511 = vmatpush.bf16.msra.mxu0 %v440
        %512 = vmatpush.bf16.msra.mxu0 %v437
        %513 = vmatpush.bf16.msra.mxu0 %v434
        %514 = vmatmul.bf16.gmra.mxu0 %v319
        %v515 = vpop.f32.mrf.mxu0
        %v516 = vadd.f32 0.0, %v515
        %v517 = vpop.f32.mrf.mxu0
        %518 = vdwg.mxu0
        %v519 = vadd.f32 %v316, %v490
        %v520 = vadd.f32 %v317, %v503
        %v521 = vadd.f32 %v318, %v516
        %522 = vst [vmem:[#allocation2] sm:$0xff] %v519
        %523 = vst [vmem:[#allocation2 + $0x8] sm:$0xff] %v520
        %524 = vst [vmem:[#allocation2 + $0x10] sm:$0xff] %v521
        // Predicated region
        $region53: #{tpu_custom_call.1} parent=35 // pred_check
          %p525 = pneg %p309
        $region54: #{tpu_custom_call.1} parent=35 // pred_check_branch
          %527 = sbr.rel (%p525) target = $region56
        $region55: #{tpu_custom_call.1} parent=35 // pred_region
          %v528 = vld [vmem:[#allocation2] sm:$0xff]
          %v529 = vld [vmem:[#allocation2 + $0x8] sm:$0xff]
          %v530 = vld [vmem:[#allocation2 + $0x10] sm:$0xff]
          %v531 = vld [vmem:[#allocation8] sm:$0x7]
          %v533 = vperm.slane %v531, 0
          %v534 = vperm.slane %v531, 1
          %v535 = vperm.slane %v531, 2
          %v539 = vadd.f32 %v528, %v533
          %v540 = vadd.f32 %v529, %v534
          %v541 = vadd.f32 %v530, %v535
          %v542 = vmul.f32 %v540, 1.442695
          %v543 = vpow.pop %v542
          %v544 = vld [vmem:[%s3] sm:$0x1]
          %v546 = vperm.slane %v544, 0
          %v548 = vmul.f32 %v543, %v546
          %v549 = vadd.f32 %v548, %v539
          %550 = vst [vmem:[%s300] sm:$0xff] %v549
          %551 = vst [vmem:[%s307] sm:$0xff] %v541
        $region56: #{tpu_custom_call.1} parent=35 // pred_fallthru
          _
        %s552 = sand.u32 %s143, 1
        %s553 = scalar_lea.sflag [#allocation5], %s552
        %s554 = sand.u32 %s143, 1
        %s555 = smul.addr %s554, 8
        %s556 = scalar_lea.vmem [#allocation9], %s555
        %s557 = sand.u32 %s169, 1
        %s558 = scalar_lea.sflag [#allocation11], %s557
        %s559 = sand.u32 %s169, 1
        %s560 = smul.addr %s559, 8
        %s561 = scalar_lea.vmem [#allocation10], %s560
        // Predicated region
        $region57: #{tpu_custom_call.1} parent=35 // pred_check
          %p562 = pneg %p153
        $region58: #{tpu_custom_call.1} parent=35 // pred_check_branch
          %564 = sbr.rel (%p562) target = $region60
        $region59: #{tpu_custom_call.1} parent=35 // pred_region
          %566 = vsyncadd %s553, 0
          %s567 = smul.addr %s31, 8
          %s568 = scalar_lea.hbm %s4, %s567
          %s570 = sshll.u32 %s556, 4
          %s571 = int_to_ptr.vmem [resolvable:$true] %s570
          %s572 = sshll.u32 %s568, 4
          %s573 = int_to_ptr.hbm [resolvable:$true] %s572
          %575 = dma.vmem_to_hbm [thread:$0]  %s571, 128, %s573, %s553
        $region60: #{tpu_custom_call.1} parent=35 // pred_fallthru
          _
        // Predicated region
        $region61: #{tpu_custom_call.1} parent=35 // pred_check
          %p576 = pneg %p179
        $region62: #{tpu_custom_call.1} parent=35 // pred_check_branch
          %578 = sbr.rel (%p576) target = $region64
        $region63: #{tpu_custom_call.1} parent=35 // pred_region
          %580 = vsyncadd %s558, 0
          %s581 = smul.addr %s31, 8
          %s582 = scalar_lea.hbm %s5, %s581
          %s584 = sshll.u32 %s561, 4
          %s585 = int_to_ptr.vmem [resolvable:$true] %s584
          %s586 = sshll.u32 %s582, 4
          %s587 = int_to_ptr.hbm [resolvable:$true] %s586
          %589 = dma.vmem_to_hbm [thread:$0]  %s585, 128, %s587, %s558
        $region64: #{tpu_custom_call.1} parent=35 // pred_fallthru
          _
      $region36: #{tpu_custom_call.1} parent=5 // pred_fallthru
        _
      %p590 = scmp.le.s32.totalorder 2, %s22
      // Predicated region
      $region65: #{tpu_custom_call.1} parent=5 // pred_check
        %p591 = pneg %p590
      $region66: #{tpu_custom_call.1} parent=5 // pred_check_branch
        %593 = sbr.rel (%p591) target = $region68
      $region67: #{tpu_custom_call.1} parent=5 // pred_region
        %s594 = ssub.s32 %s22, 2
        // Predicated region
        $region69: #{tpu_custom_call.1} parent=67 // pred_check
          %p595 = pneg %p159
        $region70: #{tpu_custom_call.1} parent=67 // pred_check_branch
          %597 = sbr.rel (%p595) target = $region72
        $region71: #{tpu_custom_call.1} parent=67 // pred_region
          %s598 = sand.u32 %s144, 1
          %s599 = scalar_lea.sflag [#allocation5], %s598
          %s600 = sand.u32 %s144, 1
          %s601 = smul.addr %s600, 8
          %s602 = scalar_lea.vmem [#allocation9], %s601
          %604 = dma.done %s599, 128
        $region72: #{tpu_custom_call.1} parent=67 // pred_fallthru
          _
        // Predicated region
        $region73: #{tpu_custom_call.1} parent=67 // pred_check
          %p605 = pneg %p185
        $region74: #{tpu_custom_call.1} parent=67 // pred_check_branch
          %607 = sbr.rel (%p605) target = $region76
        $region75: #{tpu_custom_call.1} parent=67 // pred_region
          %s608 = sand.u32 %s170, 1
          %s609 = scalar_lea.sflag [#allocation11], %s608
          %s610 = sand.u32 %s170, 1
          %s611 = smul.addr %s610, 8
          %s612 = scalar_lea.vmem [#allocation10], %s611
          %614 = dma.done %s609, 128
        $region76: #{tpu_custom_call.1} parent=67 // pred_fallthru
          _
      $region68: #{tpu_custom_call.1} parent=5 // pred_fallthru
        _
    $region6: #{tpu_custom_call.1} parent=1 // loop_footer
      %s26 = sadd.s32 1, %s22
    $region7: #{tpu_custom_call.1} parent=1 // loop_footer_branch
      %21 = sbr.rel target = $region3
    $region8: #{tpu_custom_call.1} parent=1 // loop_exit
      _
    %615 = vsyncpa [#allocation4], 1
    %s616 = scalar_lea.sflag [#allocation4], 1
    %617 = vsyncpa %s616, 1
    %618 = vsyncpa [#allocation7], 1
    %619 = vsyncpa [#allocation5], 1
    %s620 = scalar_lea.sflag [#allocation5], 1
    %621 = vsyncpa %s620, 1
    %622 = vsyncpa [#allocation11], 1
    %s623 = scalar_lea.sflag [#allocation11], 1
    %624 = vsyncpa %s623, 1

</llo_original>
